<compile_context>
chip_gen: v7x
topology: tpu7x:2x2x1
jax: 0.10.0
libtpu: 0.0.40
codegen_flags: <defaults>
</compile_context>

<pallas_src>
import jax
import jax.numpy as jnp
from jax.experimental import pallas as pl
from jax.experimental.pallas import tpu as pltpu

EPS = 1e-3


def conv_bn_kernel(w_ref, x_ref, gb_ref, o_ref):
    # w_ref:  (tco, Cin)  bf16 slice of the 1x1-conv weight (or full weight)
    # x_ref:  (Cin, P)    f32, channels on sublanes, pixels on lanes
    # gb_ref: (tco, 2)    f32, column 0 = gamma, column 1 = beta
    # o_ref:  (tco, P)    f32
    w = w_ref[...].astype(jnp.float32)                # bf16 -> f32 upcast in VMEM
    y = jnp.dot(w, x_ref[...], preferred_element_type=jnp.float32)

    p = y.shape[-1]
    inv_p = 1.0 / p                                   # static compile-time const
    s = jnp.sum(y, axis=-1, keepdims=True)            # (tco, 1)
    ss = jnp.sum(y * y, axis=-1, keepdims=True)       # (tco, 1)
    mean = s * inv_p
    # One-pass biased variance (E[y^2] - E[y]^2); fine here since per-channel
    # mean is small relative to std for this layer's activations.
    var = ss * inv_p - mean * mean
    inv_std = jax.lax.rsqrt(var + EPS)

    gamma = gb_ref[:, 0:1]                            # (tco, 1)
    beta = gb_ref[:, 1:2]                             # (tco, 1)
    scale = gamma * inv_std
    shift = beta - mean * scale
    o_ref[...] = y * scale + shift


def _num_tensorcores():
    """Best-effort TensorCore count per chip (v7x -> 2, v5e/v6e -> 1)."""
    try:
        info = pltpu.get_tpu_info()
        for attr in ("num_tensorcores", "num_tensor_cores", "tensor_core_count",
                     "tensorcores_per_chip", "num_cores", "cores_per_chip",
                     "core_count"):
            n = getattr(info, attr, None)
            if isinstance(n, int) and n >= 1:
                return n
    except Exception:
        pass
    try:
        kind = str(jax.devices()[0].device_kind).lower()
        if "v7" in kind:
            return 2
    except Exception:
        pass
    return 1


def conv_bn_forward(x_nchw, conv_w, gamma, beta, *, co_splits=None):
    """x_nchw: (N, Cin, H, W) f32; conv_w: (Cout, Cin, 1, 1) (bf16 param OK);
    gamma/beta: (Cout,) f32."""
    N, Cin, H, W = x_nchw.shape
    Cout = conv_w.shape[0]
    P = N * H * W

    if N == 1:
        x_mat = x_nchw.reshape(Cin, P)                # pure reshape, no transpose
    else:
        # General batched path needs one transpose; the module uses N == 1.
        x_mat = jnp.transpose(x_nchw, (1, 0, 2, 3)).reshape(Cin, P)

    w_mat = conv_w.reshape(Cout, Cin)                 # keep caller's (bf16) dtype
    gb = jnp.stack([gamma, beta], axis=-1)            # (Cout, 2): one DMA for BN params

    if co_splits is None:
        co_splits = _num_tensorcores()
    if co_splits < 1 or Cout % co_splits != 0 or (Cout // co_splits) % 8 != 0:
        co_splits = 1

    cost = pl.CostEstimate(
        flops=2 * Cout * Cin * P + 6 * Cout * P,
        transcendentals=Cout,
        bytes_accessed=(x_mat.dtype.itemsize * Cin * P
                        + w_mat.dtype.itemsize * Cout * Cin
                        + gb.dtype.itemsize * 2 * Cout
                        + 4 * Cout * P),
    )
    out_shape = jax.ShapeDtypeStruct((Cout, P), jnp.float32)

    if co_splits == 1:
        # Single TensorCore: no grid, whole arrays resident in VMEM,
        # one DMA in -> one matmul -> one store out.
        out_mat = pl.pallas_call(
            conv_bn_kernel,
            out_shape=out_shape,
            cost_estimate=cost,
        )(w_mat, x_mat, gb)
    else:
        # Multi-TensorCore chip (v7x): split Cout across cores. Stats are
        # per-channel, so no cross-core reduction is needed.
        tco = Cout // co_splits
        out_mat = pl.pallas_call(
            conv_bn_kernel,
            out_shape=out_shape,
            grid_spec=pl.GridSpec(
                grid=(co_splits,),
                in_specs=[
                    pl.BlockSpec((tco, Cin), lambda i: (i, 0)),
                    pl.BlockSpec((Cin, P), lambda i: (0, 0)),
                    pl.BlockSpec((tco, 2), lambda i: (i, 0)),
                ],
                out_specs=pl.BlockSpec((tco, P), lambda i: (i, 0)),
            ),
            compiler_params=pltpu.CompilerParams(
                dimension_semantics=(pltpu.CORE_PARALLEL,)),
            cost_estimate=cost,
        )(w_mat, x_mat, gb)

    if N == 1:
        return out_mat.reshape(1, Cout, H, W)
    return jnp.transpose(out_mat.reshape(Cout, N, H, W), (1, 0, 2, 3))


def _reference(x_nchw, conv_w_f32, gamma, beta):
    N, Cin, H, W = x_nchw.shape
    Cout = conv_w_f32.shape[0]
    w2 = conv_w_f32.reshape(Cout, Cin)
    y = jnp.einsum("oi,nihw->nohw", w2, x_nchw)
    mean = jnp.mean(y, axis=(0, 2, 3), keepdims=True)
    var = jnp.var(y, axis=(0, 2, 3), keepdims=True)   # biased (BN training)
    return ((y - mean) * jax.lax.rsqrt(var + EPS)
            * gamma.reshape(1, Cout, 1, 1) + beta.reshape(1, Cout, 1, 1))


if __name__ == "__main__":
    N, Cin, H, W = 1, 1056, 14, 14
    Cout = 176

    key = jax.random.PRNGKey(0)
    k_x, k_w, k_g, k_b = jax.random.split(key, 4)

    x = jax.random.normal(k_x, (N, Cin, H, W), dtype=jnp.float32)
    conv_w = jax.random.normal(k_w, (Cout, Cin, 1, 1), dtype=jnp.float32) * 0.02
    gamma = jax.random.normal(k_g, (Cout,), dtype=jnp.float32) * 0.1 + 1.0
    beta = jax.random.normal(k_b, (Cout,), dtype=jnp.float32) * 0.1

    # Persistent bf16 weight parameter: cast ONCE at init (not per forward call).
    conv_w_bf16 = conv_w.astype(jnp.bfloat16)
    conv_w_bf16 = jax.block_until_ready(conv_w_bf16)

    out = conv_bn_forward(x, conv_w_bf16, gamma, beta)
    jax.block_until_ready(out)
    assert out.shape == (N, Cout, H, W)

    # Reference uses the same (bf16-rounded) weight so only the fused BN math
    # is being compared.
    ref = _reference(x, conv_w_bf16.astype(jnp.float32), gamma, beta)
    assert jnp.allclose(out, ref, rtol=2e-2, atol=2e-2)

    print("KERNEL_OK")
</pallas_src>

<mosaic_0001>
module attributes {stable_mosaic.version = 11 : i64} {
  func.func @conv_bn_kernel(%arg0: memref<176x1056xbf16, #tpu.memory_space<vmem>>, %arg1: memref<1056x196xf32, #tpu.memory_space<vmem>>, %arg2: memref<176x2xf32, #tpu.memory_space<vmem>>, %arg3: memref<176x196xf32, #tpu.memory_space<vmem>>) attributes {dimension_semantics = [], scalar_prefetch = 0 : i64, scratch_operands = 0 : i64, tpu.core_type = #tpu.core_type<tc>} {
    %c0 = arith.constant 0 : index
    %c0_0 = arith.constant 0 : index
    %0 = vector.load %arg0[%c0, %c0_0] : memref<176x1056xbf16, #tpu.memory_space<vmem>>, vector<176x1056xbf16>
    %1 = arith.extf %0 : vector<176x1056xbf16> to vector<176x1056xf32>
    %c0_1 = arith.constant 0 : index
    %c0_2 = arith.constant 0 : index
    %2 = vector.load %arg1[%c0_1, %c0_2] : memref<1056x196xf32, #tpu.memory_space<vmem>>, vector<1056x196xf32>
    %cst = arith.constant dense<0.000000e+00> : vector<176x196xf32>
    %3 = tpu.matmul %1, %2, %cst {dimension_numbers = #tpu.dot_dimension_numbers<[1], [0], [0], [1], [0, 0, 1, 1], [], []>} : vector<176x1056xf32>, vector<1056x196xf32>, vector<176x196xf32> -> vector<176x196xf32>
    %cst_3 = arith.constant dense<0.000000e+00> : vector<176xf32>
    %4 = vector.multi_reduction <add>, %3, %cst_3 [1] : vector<176x196xf32> to vector<176xf32>
    %5 = vector.shape_cast %4 : vector<176xf32> to vector<176x1xf32>
    %6 = arith.mulf %3, %3 : vector<176x196xf32>
    %cst_4 = arith.constant dense<0.000000e+00> : vector<176xf32>
    %7 = vector.multi_reduction <add>, %6, %cst_4 [1] : vector<176x196xf32> to vector<176xf32>
    %8 = vector.shape_cast %7 : vector<176xf32> to vector<176x1xf32>
    %cst_5 = arith.constant 0.00510204071 : f32
    %9 = vector.broadcast %cst_5 : f32 to vector<176x1xf32>
    %10 = arith.mulf %5, %9 : vector<176x1xf32>
    %cst_6 = arith.constant 0.00510204071 : f32
    %11 = vector.broadcast %cst_6 : f32 to vector<176x1xf32>
    %12 = arith.mulf %8, %11 : vector<176x1xf32>
    %13 = arith.mulf %10, %10 : vector<176x1xf32>
    %14 = arith.subf %12, %13 : vector<176x1xf32>
    %cst_7 = arith.constant 1.000000e-03 : f32
    %15 = vector.broadcast %cst_7 : f32 to vector<176x1xf32>
    %16 = arith.addf %14, %15 : vector<176x1xf32>
    %17 = math.rsqrt %16 : vector<176x1xf32>
    %c0_8 = arith.constant 0 : index
    %c0_9 = arith.constant 0 : index
    %18 = vector.load %arg2[%c0_8, %c0_9] : memref<176x2xf32, #tpu.memory_space<vmem>>, vector<176x1xf32>
    %c0_10 = arith.constant 0 : index
    %c1 = arith.constant 1 : index
    %19 = vector.load %arg2[%c0_10, %c1] : memref<176x2xf32, #tpu.memory_space<vmem>>, vector<176x1xf32>
    %20 = arith.mulf %18, %17 : vector<176x1xf32>
    %21 = arith.mulf %10, %20 : vector<176x1xf32>
    %22 = arith.subf %19, %21 : vector<176x1xf32>
    %23 = vector.broadcast %20 : vector<176x1xf32> to vector<176x196xf32>
    %24 = arith.mulf %3, %23 : vector<176x196xf32>
    %25 = vector.broadcast %22 : vector<176x1xf32> to vector<176x196xf32>
    %26 = arith.addf %24, %25 : vector<176x196xf32>
    %c0_11 = arith.constant 0 : index
    %c0_12 = arith.constant 0 : index
    %27 = vector.load %arg3[%c0_11, %c0_12] : memref<176x196xf32, #tpu.memory_space<vmem>>, vector<176x196xf32>
    tpu.vector_store %arg3[%c0_11, %c0_12], %26 {strides = array<i32>} : memref<176x196xf32, #tpu.memory_space<vmem>>, vector<176x196xf32>,
    return
  }
}

</mosaic_0001>

<llo_original>
// kernel: tpu_custom_call.1
$region0: #{tpu_custom_call.1}
  #allocation0 [shape = 'u32[]', space=smem, size = 0x4, offset = 0x4, fixed_abs, tag = 'smem constant byte address 0x4 - core index']
  #allocation1 [shape = 'u32[144,128]{1,0:T(1,128)}', space=vmem, size = 0x12000, scoped, tag = 'internal scratch']
  %s0 = inlined_call_operand.vmem [shape: bf16[176,1056], index: 0, kind: input, shape index: {}]
  %s1 = inlined_call_operand.vmem [shape: f32[1056,196], index: 1, kind: input, shape index: {}]
  %s2 = inlined_call_operand.vmem [shape: f32[176,2], index: 2, kind: input, shape index: {}]
  %s3 = inlined_call_operand.hbm [shape: f32[176,196], index: 3, kind: output, shape index: {}]
  %s4 = sld [smem:[#allocation0]]
  $region22: #{tpu_custom_call.1} parent=0
    _
  %s6 = ssub.s32 1, %s4
  %s7 = scalar_select 0, %s6, %s4
  $region1: #{tpu_custom_call.1} parent=0
    #allocation2 [shape = 'u8[180224]{0}', space=vmem, size = 0x2c000, scoped, tag = 'output window, operand 0, single buffered']
    #allocation3 [shape = 's32[1]{0}', space=sflag, size = 0x4, scoped, tag = 'scoped memory for tpu_custom_call.1']
    %8 = vsyncpa [#allocation3], 0
    // Predicated region
    $region2: #{tpu_custom_call.1} parent=1 // pred_check
      _
    $region3: #{tpu_custom_call.1} parent=1 // pred_check_branch
      %10 = sbr.rel (0) target = $region5
    $region4: #{tpu_custom_call.1} parent=1 // pred_region
      _
    $region5: #{tpu_custom_call.1} parent=1 // pred_fallthru
      _
    // Predicated region
    $region6: #{tpu_custom_call.1} parent=1 // pred_check
      _
    $region7: #{tpu_custom_call.1} parent=1 // pred_check_branch
      %12 = sbr.rel (0) target = $region9
    $region8: #{tpu_custom_call.1} parent=1 // pred_region
      _
    $region9: #{tpu_custom_call.1} parent=1 // pred_fallthru
      _
    // Predicated region
    $region10: #{tpu_custom_call.1} parent=1 // pred_check
      _
    $region11: #{tpu_custom_call.1} parent=1 // pred_check_branch
      %14 = sbr.rel (0) target = $region13
    $region12: #{tpu_custom_call.1} parent=1 // pred_region
      _
    $region13: #{tpu_custom_call.1} parent=1 // pred_fallthru
      _
    %v15 = vld [vmem:[%s0] sm:$0xff]
    %v16 = vld [vmem:[%s0 + $0x8] sm:$0xff]
    %v17 = vld [vmem:[%s0 + $0x10] sm:$0xff]
    %v18 = vld [vmem:[%s0 + $0x18] sm:$0xff]
    %v19 = vld [vmem:[%s0 + $0x20] sm:$0xf]
    %v20 = vld [vmem:[%s0 + $0x24] sm:$0xff]
    %v21 = vld [vmem:[%s0 + $0x2c] sm:$0xff]
    %v22 = vld [vmem:[%s0 + $0x34] sm:$0xff]
    %v23 = vld [vmem:[%s0 + $0x3c] sm:$0xff]
    %v24 = vld [vmem:[%s0 + $0x44] sm:$0xf]
    %v25 = vld [vmem:[%s0 + $0x48] sm:$0xff]
    %v26 = vld [vmem:[%s0 + $0x50] sm:$0xff]
    %v27 = vld [vmem:[%s0 + $0x58] sm:$0xff]
    %v28 = vld [vmem:[%s0 + $0x60] sm:$0xff]
    %v29 = vld [vmem:[%s0 + $0x68] sm:$0xf]
    %v30 = vld [vmem:[%s0 + $0x6c] sm:$0xff]
    %v31 = vld [vmem:[%s0 + $0x74] sm:$0xff]
    %v32 = vld [vmem:[%s0 + $0x7c] sm:$0xff]
    %v33 = vld [vmem:[%s0 + $0x84] sm:$0xff]
    %v34 = vld [vmem:[%s0 + $0x8c] sm:$0xf]
    %v35 = vld [vmem:[%s0 + $0x90] sm:$0xff]
    %v36 = vld [vmem:[%s0 + $0x98] sm:$0xff]
    %v37 = vld [vmem:[%s0 + $0xa0] sm:$0xff]
    %v38 = vld [vmem:[%s0 + $0xa8] sm:$0xff]
    %v39 = vld [vmem:[%s0 + $0xb0] sm:$0xf]
    %v40 = vld [vmem:[%s0 + $0xb4] sm:$0xff]
    %v41 = vld [vmem:[%s0 + $0xbc] sm:$0xff]
    %v42 = vld [vmem:[%s0 + $0xc4] sm:$0xff]
    %v43 = vld [vmem:[%s0 + $0xcc] sm:$0xff]
    %v44 = vld [vmem:[%s0 + $0xd4] sm:$0xf]
    %v45 = vld [vmem:[%s0 + $0xd8] sm:$0xff]
    %v46 = vld [vmem:[%s0 + $0xe0] sm:$0xff]
    %v47 = vld [vmem:[%s0 + $0xe8] sm:$0xff]
    %v48 = vld [vmem:[%s0 + $0xf0] sm:$0xff]
    %v49 = vld [vmem:[%s0 + $0xf8] sm:$0xf]
    %v50 = vld [vmem:[%s0 + $0xfc] sm:$0xff]
    %v51 = vld [vmem:[%s0 + $0x104] sm:$0xff]
    %v52 = vld [vmem:[%s0 + $0x10c] sm:$0xff]
    %v53 = vld [vmem:[%s0 + $0x114] sm:$0xff]
    %v54 = vld [vmem:[%s0 + $0x11c] sm:$0xf]
    %v55 = vld [vmem:[%s0 + $0x120] sm:$0xff]
    %v56 = vld [vmem:[%s0 + $0x128] sm:$0xff]
    %v57 = vld [vmem:[%s0 + $0x130] sm:$0xff]
    %v58 = vld [vmem:[%s0 + $0x138] sm:$0xff]
    %v59 = vld [vmem:[%s0 + $0x140] sm:$0xf]
    %v60 = vld [vmem:[%s0 + $0x144] sm:$0xff]
    %v61 = vld [vmem:[%s0 + $0x14c] sm:$0xff]
    %v62 = vld [vmem:[%s0 + $0x154] sm:$0xff]
    %v63 = vld [vmem:[%s0 + $0x15c] sm:$0xff]
    %v64 = vld [vmem:[%s0 + $0x164] sm:$0xf]
    %v65 = vld [vmem:[%s0 + $0x168] sm:$0xff]
    %v66 = vld [vmem:[%s0 + $0x170] sm:$0xff]
    %v67 = vld [vmem:[%s0 + $0x178] sm:$0xff]
    %v68 = vld [vmem:[%s0 + $0x180] sm:$0xff]
    %v69 = vld [vmem:[%s0 + $0x188] sm:$0xf]
    %v70 = vld [vmem:[%s0 + $0x18c] sm:$0xff]
    %v71 = vld [vmem:[%s0 + $0x194] sm:$0xff]
    %v72 = vld [vmem:[%s0 + $0x19c] sm:$0xff]
    %v73 = vld [vmem:[%s0 + $0x1a4] sm:$0xff]
    %v74 = vld [vmem:[%s0 + $0x1ac] sm:$0xf]
    %v75 = vld [vmem:[%s0 + $0x1b0] sm:$0xff]
    %v76 = vld [vmem:[%s0 + $0x1b8] sm:$0xff]
    %v77 = vld [vmem:[%s0 + $0x1c0] sm:$0xff]
    %v78 = vld [vmem:[%s0 + $0x1c8] sm:$0xff]
    %v79 = vld [vmem:[%s0 + $0x1d0] sm:$0xf]
    %v80 = vld [vmem:[%s0 + $0x1d4] sm:$0xff]
    %v81 = vld [vmem:[%s0 + $0x1dc] sm:$0xff]
    %v82 = vld [vmem:[%s0 + $0x1e4] sm:$0xff]
    %v83 = vld [vmem:[%s0 + $0x1ec] sm:$0xff]
    %v84 = vld [vmem:[%s0 + $0x1f4] sm:$0xf]
    %v85 = vld [vmem:[%s0 + $0x1f8] sm:$0xff]
    %v86 = vld [vmem:[%s0 + $0x200] sm:$0xff]
    %v87 = vld [vmem:[%s0 + $0x208] sm:$0xff]
    %v88 = vld [vmem:[%s0 + $0x210] sm:$0xff]
    %v89 = vld [vmem:[%s0 + $0x218] sm:$0xf]
    %v90 = vld [vmem:[%s0 + $0x21c] sm:$0xff]
    %v91 = vld [vmem:[%s0 + $0x224] sm:$0xff]
    %v92 = vld [vmem:[%s0 + $0x22c] sm:$0xff]
    %v93 = vld [vmem:[%s0 + $0x234] sm:$0xff]
    %v94 = vld [vmem:[%s0 + $0x23c] sm:$0xf]
    %v95 = vld [vmem:[%s0 + $0x240] sm:$0xff]
    %v96 = vld [vmem:[%s0 + $0x248] sm:$0xff]
    %v97 = vld [vmem:[%s0 + $0x250] sm:$0xff]
    %v98 = vld [vmem:[%s0 + $0x258] sm:$0xff]
    %v99 = vld [vmem:[%s0 + $0x260] sm:$0xf]
    %v100 = vld [vmem:[%s0 + $0x264] sm:$0xff]
    %v101 = vld [vmem:[%s0 + $0x26c] sm:$0xff]
    %v102 = vld [vmem:[%s0 + $0x274] sm:$0xff]
    %v103 = vld [vmem:[%s0 + $0x27c] sm:$0xff]
    %v104 = vld [vmem:[%s0 + $0x284] sm:$0xf]
    %v105 = vld [vmem:[%s0 + $0x288] sm:$0xff]
    %v106 = vld [vmem:[%s0 + $0x290] sm:$0xff]
    %v107 = vld [vmem:[%s0 + $0x298] sm:$0xff]
    %v108 = vld [vmem:[%s0 + $0x2a0] sm:$0xff]
    %v109 = vld [vmem:[%s0 + $0x2a8] sm:$0xf]
    %v110 = vld [vmem:[%s0 + $0x2ac] sm:$0xff]
    %v111 = vld [vmem:[%s0 + $0x2b4] sm:$0xff]
    %v112 = vld [vmem:[%s0 + $0x2bc] sm:$0xff]
    %v113 = vld [vmem:[%s0 + $0x2c4] sm:$0xff]
    %v114 = vld [vmem:[%s0 + $0x2cc] sm:$0xf]
    %v115 = vld [vmem:[%s0 + $0x2d0] sm:$0xff]
    %v116 = vld [vmem:[%s0 + $0x2d8] sm:$0xff]
    %v117 = vld [vmem:[%s0 + $0x2e0] sm:$0xff]
    %v118 = vld [vmem:[%s0 + $0x2e8] sm:$0xff]
    %v119 = vld [vmem:[%s0 + $0x2f0] sm:$0xf]
    %v120 = vld [vmem:[%s0 + $0x2f4] sm:$0xff]
    %v121 = vld [vmem:[%s0 + $0x2fc] sm:$0xff]
    %v122 = vld [vmem:[%s0 + $0x304] sm:$0xff]
    %v123 = vld [vmem:[%s0 + $0x30c] sm:$0xff]
    %v124 = vld [vmem:[%s0 + $0x314] sm:$0xf]
    %v125 = vunpack.c.l.bf16 %v15
    %v126 = vunpack.c.h.bf16 %v15
    %v127 = vunpack.c.l.bf16 %v16
    %v128 = vunpack.c.h.bf16 %v16
    %v129 = vunpack.c.l.bf16 %v17
    %v130 = vunpack.c.h.bf16 %v17
    %v131 = vunpack.c.l.bf16 %v18
    %v132 = vunpack.c.h.bf16 %v18
    %v133 = vunpack.c.l.bf16 %v19
    %v134 = vunpack.c.l.bf16 %v20
    %v135 = vunpack.c.h.bf16 %v20
    %v136 = vunpack.c.l.bf16 %v21
    %v137 = vunpack.c.h.bf16 %v21
    %v138 = vunpack.c.l.bf16 %v22
    %v139 = vunpack.c.h.bf16 %v22
    %v140 = vunpack.c.l.bf16 %v23
    %v141 = vunpack.c.h.bf16 %v23
    %v142 = vunpack.c.l.bf16 %v24
    %v143 = vunpack.c.l.bf16 %v25
    %v144 = vunpack.c.h.bf16 %v25
    %v145 = vunpack.c.l.bf16 %v26
    %v146 = vunpack.c.h.bf16 %v26
    %v147 = vunpack.c.l.bf16 %v27
    %v148 = vunpack.c.h.bf16 %v27
    %v149 = vunpack.c.l.bf16 %v28
    %v150 = vunpack.c.h.bf16 %v28
    %v151 = vunpack.c.l.bf16 %v29
    %v152 = vunpack.c.l.bf16 %v30
    %v153 = vunpack.c.h.bf16 %v30
    %v154 = vunpack.c.l.bf16 %v31
    %v155 = vunpack.c.h.bf16 %v31
    %v156 = vunpack.c.l.bf16 %v32
    %v157 = vunpack.c.h.bf16 %v32
    %v158 = vunpack.c.l.bf16 %v33
    %v159 = vunpack.c.h.bf16 %v33
    %v160 = vunpack.c.l.bf16 %v34
    %v161 = vunpack.c.l.bf16 %v35
    %v162 = vunpack.c.h.bf16 %v35
    %v163 = vunpack.c.l.bf16 %v36
    %v164 = vunpack.c.h.bf16 %v36
    %v165 = vunpack.c.l.bf16 %v37
    %v166 = vunpack.c.h.bf16 %v37
    %v167 = vunpack.c.l.bf16 %v38
    %v168 = vunpack.c.h.bf16 %v38
    %v169 = vunpack.c.l.bf16 %v39
    %v170 = vunpack.c.l.bf16 %v40
    %v171 = vunpack.c.h.bf16 %v40
    %v172 = vunpack.c.l.bf16 %v41
    %v173 = vunpack.c.h.bf16 %v41
    %v174 = vunpack.c.l.bf16 %v42
    %v175 = vunpack.c.h.bf16 %v42
    %v176 = vunpack.c.l.bf16 %v43
    %v177 = vunpack.c.h.bf16 %v43
    %v178 = vunpack.c.l.bf16 %v44
    %v179 = vunpack.c.l.bf16 %v45
    %v180 = vunpack.c.h.bf16 %v45
    %v181 = vunpack.c.l.bf16 %v46
    %v182 = vunpack.c.h.bf16 %v46
    %v183 = vunpack.c.l.bf16 %v47
    %v184 = vunpack.c.h.bf16 %v47
    %v185 = vunpack.c.l.bf16 %v48
    %v186 = vunpack.c.h.bf16 %v48
    %v187 = vunpack.c.l.bf16 %v49
    %v188 = vunpack.c.l.bf16 %v50
    %v189 = vunpack.c.h.bf16 %v50
    %v190 = vunpack.c.l.bf16 %v51
    %v191 = vunpack.c.h.bf16 %v51
    %v192 = vunpack.c.l.bf16 %v52
    %v193 = vunpack.c.h.bf16 %v52
    %v194 = vunpack.c.l.bf16 %v53
    %v195 = vunpack.c.h.bf16 %v53
    %v196 = vunpack.c.l.bf16 %v54
    %v197 = vunpack.c.l.bf16 %v55
    %v198 = vunpack.c.h.bf16 %v55
    %v199 = vunpack.c.l.bf16 %v56
    %v200 = vunpack.c.h.bf16 %v56
    %v201 = vunpack.c.l.bf16 %v57
    %v202 = vunpack.c.h.bf16 %v57
    %v203 = vunpack.c.l.bf16 %v58
    %v204 = vunpack.c.h.bf16 %v58
    %v205 = vunpack.c.l.bf16 %v59
    %v206 = vunpack.c.l.bf16 %v60
    %v207 = vunpack.c.h.bf16 %v60
    %v208 = vunpack.c.l.bf16 %v61
    %v209 = vunpack.c.h.bf16 %v61
    %v210 = vunpack.c.l.bf16 %v62
    %v211 = vunpack.c.h.bf16 %v62
    %v212 = vunpack.c.l.bf16 %v63
    %v213 = vunpack.c.h.bf16 %v63
    %v214 = vunpack.c.l.bf16 %v64
    %v215 = vunpack.c.l.bf16 %v65
    %v216 = vunpack.c.h.bf16 %v65
    %v217 = vunpack.c.l.bf16 %v66
    %v218 = vunpack.c.h.bf16 %v66
    %v219 = vunpack.c.l.bf16 %v67
    %v220 = vunpack.c.h.bf16 %v67
    %v221 = vunpack.c.l.bf16 %v68
    %v222 = vunpack.c.h.bf16 %v68
    %v223 = vunpack.c.l.bf16 %v69
    %v224 = vunpack.c.l.bf16 %v70
    %v225 = vunpack.c.h.bf16 %v70
    %v226 = vunpack.c.l.bf16 %v71
    %v227 = vunpack.c.h.bf16 %v71
    %v228 = vunpack.c.l.bf16 %v72
    %v229 = vunpack.c.h.bf16 %v72
    %v230 = vunpack.c.l.bf16 %v73
    %v231 = vunpack.c.h.bf16 %v73
    %v232 = vunpack.c.l.bf16 %v74
    %v233 = vunpack.c.l.bf16 %v75
    %v234 = vunpack.c.h.bf16 %v75
    %v235 = vunpack.c.l.bf16 %v76
    %v236 = vunpack.c.h.bf16 %v76
    %v237 = vunpack.c.l.bf16 %v77
    %v238 = vunpack.c.h.bf16 %v77
    %v239 = vunpack.c.l.bf16 %v78
    %v240 = vunpack.c.h.bf16 %v78
    %v241 = vunpack.c.l.bf16 %v79
    %v242 = vunpack.c.l.bf16 %v80
    %v243 = vunpack.c.h.bf16 %v80
    %v244 = vunpack.c.l.bf16 %v81
    %v245 = vunpack.c.h.bf16 %v81
    %v246 = vunpack.c.l.bf16 %v82
    %v247 = vunpack.c.h.bf16 %v82
    %v248 = vunpack.c.l.bf16 %v83
    %v249 = vunpack.c.h.bf16 %v83
    %v250 = vunpack.c.l.bf16 %v84
    %v251 = vunpack.c.l.bf16 %v85
    %v252 = vunpack.c.h.bf16 %v85
    %v253 = vunpack.c.l.bf16 %v86
    %v254 = vunpack.c.h.bf16 %v86
    %v255 = vunpack.c.l.bf16 %v87
    %v256 = vunpack.c.h.bf16 %v87
    %v257 = vunpack.c.l.bf16 %v88
    %v258 = vunpack.c.h.bf16 %v88
    %v259 = vunpack.c.l.bf16 %v89
    %v260 = vunpack.c.l.bf16 %v90
    %v261 = vunpack.c.h.bf16 %v90
    %v262 = vunpack.c.l.bf16 %v91
    %v263 = vunpack.c.h.bf16 %v91
    %v264 = vunpack.c.l.bf16 %v92
    %v265 = vunpack.c.h.bf16 %v92
    %v266 = vunpack.c.l.bf16 %v93
    %v267 = vunpack.c.h.bf16 %v93
    %v268 = vunpack.c.l.bf16 %v94
    %v269 = vunpack.c.l.bf16 %v95
    %v270 = vunpack.c.h.bf16 %v95
    %v271 = vunpack.c.l.bf16 %v96
    %v272 = vunpack.c.h.bf16 %v96
    %v273 = vunpack.c.l.bf16 %v97
    %v274 = vunpack.c.h.bf16 %v97
    %v275 = vunpack.c.l.bf16 %v98
    %v276 = vunpack.c.h.bf16 %v98
    %v277 = vunpack.c.l.bf16 %v99
    %v278 = vunpack.c.l.bf16 %v100
    %v279 = vunpack.c.h.bf16 %v100
    %v280 = vunpack.c.l.bf16 %v101
    %v281 = vunpack.c.h.bf16 %v101
    %v282 = vunpack.c.l.bf16 %v102
    %v283 = vunpack.c.h.bf16 %v102
    %v284 = vunpack.c.l.bf16 %v103
    %v285 = vunpack.c.h.bf16 %v103
    %v286 = vunpack.c.l.bf16 %v104
    %v287 = vunpack.c.l.bf16 %v105
    %v288 = vunpack.c.h.bf16 %v105
    %v289 = vunpack.c.l.bf16 %v106
    %v290 = vunpack.c.h.bf16 %v106
    %v291 = vunpack.c.l.bf16 %v107
    %v292 = vunpack.c.h.bf16 %v107
    %v293 = vunpack.c.l.bf16 %v108
    %v294 = vunpack.c.h.bf16 %v108
    %v295 = vunpack.c.l.bf16 %v109
    %v296 = vunpack.c.l.bf16 %v110
    %v297 = vunpack.c.h.bf16 %v110
    %v298 = vunpack.c.l.bf16 %v111
    %v299 = vunpack.c.h.bf16 %v111
    %v300 = vunpack.c.l.bf16 %v112
    %v301 = vunpack.c.h.bf16 %v112
    %v302 = vunpack.c.l.bf16 %v113
    %v303 = vunpack.c.h.bf16 %v113
    %v304 = vunpack.c.l.bf16 %v114
    %v305 = vunpack.c.l.bf16 %v115
    %v306 = vunpack.c.h.bf16 %v115
    %v307 = vunpack.c.l.bf16 %v116
    %v308 = vunpack.c.h.bf16 %v116
    %v309 = vunpack.c.l.bf16 %v117
    %v310 = vunpack.c.h.bf16 %v117
    %v311 = vunpack.c.l.bf16 %v118
    %v312 = vunpack.c.h.bf16 %v118
    %v313 = vunpack.c.l.bf16 %v119
    %v314 = vunpack.c.l.bf16 %v120
    %v315 = vunpack.c.h.bf16 %v120
    %v316 = vunpack.c.l.bf16 %v121
    %v317 = vunpack.c.h.bf16 %v121
    %v318 = vunpack.c.l.bf16 %v122
    %v319 = vunpack.c.h.bf16 %v122
    %v320 = vunpack.c.l.bf16 %v123
    %v321 = vunpack.c.h.bf16 %v123
    %v322 = vunpack.c.l.bf16 %v124
    %v323 = vld [vmem:[%s1] sm:$0xff]
    %v324 = vld [vmem:[%s1 + $0x8] sm:$0xff]
    %v325 = vld [vmem:[%s1 + $0x10] sm:$0xff]
    %v326 = vld [vmem:[%s1 + $0x18] sm:$0xff]
    %v327 = vld [vmem:[%s1 + $0x20] sm:$0xff]
    %v328 = vld [vmem:[%s1 + $0x28] sm:$0xff]
    %v329 = vld [vmem:[%s1 + $0x30] sm:$0xff]
    %v330 = vld [vmem:[%s1 + $0x38] sm:$0xff]
    %v331 = vld [vmem:[%s1 + $0x40] sm:$0xff]
    %v332 = vld [vmem:[%s1 + $0x48] sm:$0xff]
    %v333 = vld [vmem:[%s1 + $0x50] sm:$0xff]
    %v334 = vld [vmem:[%s1 + $0x58] sm:$0xff]
    %v335 = vld [vmem:[%s1 + $0x60] sm:$0xff]
    %v336 = vld [vmem:[%s1 + $0x68] sm:$0xff]
    %v337 = vld [vmem:[%s1 + $0x70] sm:$0xff]
    %v338 = vld [vmem:[%s1 + $0x78] sm:$0xff]
    %v339 = vld [vmem:[%s1 + $0x80] sm:$0xff]
    %v340 = vld [vmem:[%s1 + $0x88] sm:$0xff]
    %v341 = vld [vmem:[%s1 + $0x90] sm:$0xff]
    %v342 = vld [vmem:[%s1 + $0x98] sm:$0xff]
    %v343 = vld [vmem:[%s1 + $0xa0] sm:$0xff]
    %v344 = vld [vmem:[%s1 + $0xa8] sm:$0xff]
    %v345 = vld [vmem:[%s1 + $0xb0] sm:$0xff]
    %v346 = vld [vmem:[%s1 + $0xb8] sm:$0xff]
    %v347 = vld [vmem:[%s1 + $0xc0] sm:$0xff]
    %v348 = vld [vmem:[%s1 + $0xc8] sm:$0xff]
    %v349 = vld [vmem:[%s1 + $0xd0] sm:$0xff]
    %v350 = vld [vmem:[%s1 + $0xd8] sm:$0xff]
    %v351 = vld [vmem:[%s1 + $0xe0] sm:$0xff]
    %v352 = vld [vmem:[%s1 + $0xe8] sm:$0xff]
    %v353 = vld [vmem:[%s1 + $0xf0] sm:$0xff]
    %v354 = vld [vmem:[%s1 + $0xf8] sm:$0xff]
    %v355 = vld [vmem:[%s1 + $0x100] sm:$0xff]
    %v356 = vld [vmem:[%s1 + $0x108] sm:$0xff]
    %v357 = vld [vmem:[%s1 + $0x110] sm:$0xff]
    %v358 = vld [vmem:[%s1 + $0x118] sm:$0xff]
    %v359 = vld [vmem:[%s1 + $0x120] sm:$0xff]
    %v360 = vld [vmem:[%s1 + $0x128] sm:$0xff]
    %v361 = vld [vmem:[%s1 + $0x130] sm:$0xff]
    %v362 = vld [vmem:[%s1 + $0x138] sm:$0xff]
    %v363 = vld [vmem:[%s1 + $0x140] sm:$0xff]
    %v364 = vld [vmem:[%s1 + $0x148] sm:$0xff]
    %v365 = vld [vmem:[%s1 + $0x150] sm:$0xff]
    %v366 = vld [vmem:[%s1 + $0x158] sm:$0xff]
    %v367 = vld [vmem:[%s1 + $0x160] sm:$0xff]
    %v368 = vld [vmem:[%s1 + $0x168] sm:$0xff]
    %v369 = vld [vmem:[%s1 + $0x170] sm:$0xff]
    %v370 = vld [vmem:[%s1 + $0x178] sm:$0xff]
    %v371 = vld [vmem:[%s1 + $0x180] sm:$0xff]
    %v372 = vld [vmem:[%s1 + $0x188] sm:$0xff]
    %v373 = vld [vmem:[%s1 + $0x190] sm:$0xff]
    %v374 = vld [vmem:[%s1 + $0x198] sm:$0xff]
    %v375 = vld [vmem:[%s1 + $0x1a0] sm:$0xff]
    %v376 = vld [vmem:[%s1 + $0x1a8] sm:$0xff]
    %v377 = vld [vmem:[%s1 + $0x1b0] sm:$0xff]
    %v378 = vld [vmem:[%s1 + $0x1b8] sm:$0xff]
    %v379 = vld [vmem:[%s1 + $0x1c0] sm:$0xff]
    %v380 = vld [vmem:[%s1 + $0x1c8] sm:$0xff]
    %v381 = vld [vmem:[%s1 + $0x1d0] sm:$0xff]
    %v382 = vld [vmem:[%s1 + $0x1d8] sm:$0xff]
    %v383 = vld [vmem:[%s1 + $0x1e0] sm:$0xff]
    %v384 = vld [vmem:[%s1 + $0x1e8] sm:$0xff]
    %v385 = vld [vmem:[%s1 + $0x1f0] sm:$0xff]
    %v386 = vld [vmem:[%s1 + $0x1f8] sm:$0xff]
    %v387 = vld [vmem:[%s1 + $0x200] sm:$0xff]
    %v388 = vld [vmem:[%s1 + $0x208] sm:$0xff]
    %v389 = vld [vmem:[%s1 + $0x210] sm:$0xff]
    %v390 = vld [vmem:[%s1 + $0x218] sm:$0xff]
    %v391 = vld [vmem:[%s1 + $0x220] sm:$0xff]
    %v392 = vld [vmem:[%s1 + $0x228] sm:$0xff]
    %v393 = vld [vmem:[%s1 + $0x230] sm:$0xff]
    %v394 = vld [vmem:[%s1 + $0x238] sm:$0xff]
    %v395 = vld [vmem:[%s1 + $0x240] sm:$0xff]
    %v396 = vld [vmem:[%s1 + $0x248] sm:$0xff]
    %v397 = vld [vmem:[%s1 + $0x250] sm:$0xff]
    %v398 = vld [vmem:[%s1 + $0x258] sm:$0xff]
    %v399 = vld [vmem:[%s1 + $0x260] sm:$0xff]
    %v400 = vld [vmem:[%s1 + $0x268] sm:$0xff]
    %v401 = vld [vmem:[%s1 + $0x270] sm:$0xff]
    %v402 = vld [vmem:[%s1 + $0x278] sm:$0xff]
    %v403 = vld [vmem:[%s1 + $0x280] sm:$0xff]
    %v404 = vld [vmem:[%s1 + $0x288] sm:$0xff]
    %v405 = vld [vmem:[%s1 + $0x290] sm:$0xff]
    %v406 = vld [vmem:[%s1 + $0x298] sm:$0xff]
    %v407 = vld [vmem:[%s1 + $0x2a0] sm:$0xff]
    %v408 = vld [vmem:[%s1 + $0x2a8] sm:$0xff]
    %v409 = vld [vmem:[%s1 + $0x2b0] sm:$0xff]
    %v410 = vld [vmem:[%s1 + $0x2b8] sm:$0xff]
    %v411 = vld [vmem:[%s1 + $0x2c0] sm:$0xff]
    %v412 = vld [vmem:[%s1 + $0x2c8] sm:$0xff]
    %v413 = vld [vmem:[%s1 + $0x2d0] sm:$0xff]
    %v414 = vld [vmem:[%s1 + $0x2d8] sm:$0xff]
    %v415 = vld [vmem:[%s1 + $0x2e0] sm:$0xff]
    %v416 = vld [vmem:[%s1 + $0x2e8] sm:$0xff]
    %v417 = vld [vmem:[%s1 + $0x2f0] sm:$0xff]
    %v418 = vld [vmem:[%s1 + $0x2f8] sm:$0xff]
    %v419 = vld [vmem:[%s1 + $0x300] sm:$0xff]
    %v420 = vld [vmem:[%s1 + $0x308] sm:$0xff]
    %v421 = vld [vmem:[%s1 + $0x310] sm:$0xff]
    %v422 = vld [vmem:[%s1 + $0x318] sm:$0xff]
    %v423 = vld [vmem:[%s1 + $0x320] sm:$0xff]
    %v424 = vld [vmem:[%s1 + $0x328] sm:$0xff]
    %v425 = vld [vmem:[%s1 + $0x330] sm:$0xff]
    %v426 = vld [vmem:[%s1 + $0x338] sm:$0xff]
    %v427 = vld [vmem:[%s1 + $0x340] sm:$0xff]
    %v428 = vld [vmem:[%s1 + $0x348] sm:$0xff]
    %v429 = vld [vmem:[%s1 + $0x350] sm:$0xff]
    %v430 = vld [vmem:[%s1 + $0x358] sm:$0xff]
    %v431 = vld [vmem:[%s1 + $0x360] sm:$0xff]
    %v432 = vld [vmem:[%s1 + $0x368] sm:$0xff]
    %v433 = vld [vmem:[%s1 + $0x370] sm:$0xff]
    %v434 = vld [vmem:[%s1 + $0x378] sm:$0xff]
    %v435 = vld [vmem:[%s1 + $0x380] sm:$0xff]
    %v436 = vld [vmem:[%s1 + $0x388] sm:$0xff]
    %v437 = vld [vmem:[%s1 + $0x390] sm:$0xff]
    %v438 = vld [vmem:[%s1 + $0x398] sm:$0xff]
    %v439 = vld [vmem:[%s1 + $0x3a0] sm:$0xff]
    %v440 = vld [vmem:[%s1 + $0x3a8] sm:$0xff]
    %v441 = vld [vmem:[%s1 + $0x3b0] sm:$0xff]
    %v442 = vld [vmem:[%s1 + $0x3b8] sm:$0xff]
    %v443 = vld [vmem:[%s1 + $0x3c0] sm:$0xff]
    %v444 = vld [vmem:[%s1 + $0x3c8] sm:$0xff]
    %v445 = vld [vmem:[%s1 + $0x3d0] sm:$0xff]
    %v446 = vld [vmem:[%s1 + $0x3d8] sm:$0xff]
    %v447 = vld [vmem:[%s1 + $0x3e0] sm:$0xff]
    %v448 = vld [vmem:[%s1 + $0x3e8] sm:$0xff]
    %v449 = vld [vmem:[%s1 + $0x3f0] sm:$0xff]
    %v450 = vld [vmem:[%s1 + $0x3f8] sm:$0xff]
    %v451 = vld [vmem:[%s1 + $0x400] sm:$0xff]
    %v452 = vld [vmem:[%s1 + $0x408] sm:$0xff]
    %v453 = vld [vmem:[%s1 + $0x410] sm:$0xff]
    %v454 = vld [vmem:[%s1 + $0x418] sm:$0xff]
    %v455 = vld [vmem:[%s1 + $0x420] sm:$0xff]
    %v456 = vld [vmem:[%s1 + $0x428] sm:$0xff]
    %v457 = vld [vmem:[%s1 + $0x430] sm:$0xff]
    %v458 = vld [vmem:[%s1 + $0x438] sm:$0xff]
    %v459 = vld [vmem:[%s1 + $0x440] sm:$0xff]
    %v460 = vld [vmem:[%s1 + $0x448] sm:$0xff]
    %v461 = vld [vmem:[%s1 + $0x450] sm:$0xff]
    %v462 = vld [vmem:[%s1 + $0x458] sm:$0xff]
    %v463 = vld [vmem:[%s1 + $0x460] sm:$0xff]
    %v464 = vld [vmem:[%s1 + $0x468] sm:$0xff]
    %v465 = vld [vmem:[%s1 + $0x470] sm:$0xff]
    %v466 = vld [vmem:[%s1 + $0x478] sm:$0xff]
    %v467 = vld [vmem:[%s1 + $0x480] sm:$0xff]
    %v468 = vld [vmem:[%s1 + $0x488] sm:$0xff]
    %v469 = vld [vmem:[%s1 + $0x490] sm:$0xff]
    %v470 = vld [vmem:[%s1 + $0x498] sm:$0xff]
    %v471 = vld [vmem:[%s1 + $0x4a0] sm:$0xff]
    %v472 = vld [vmem:[%s1 + $0x4a8] sm:$0xff]
    %v473 = vld [vmem:[%s1 + $0x4b0] sm:$0xff]
    %v474 = vld [vmem:[%s1 + $0x4b8] sm:$0xff]
    %v475 = vld [vmem:[%s1 + $0x4c0] sm:$0xff]
    %v476 = vld [vmem:[%s1 + $0x4c8] sm:$0xff]
    %v477 = vld [vmem:[%s1 + $0x4d0] sm:$0xff]
    %v478 = vld [vmem:[%s1 + $0x4d8] sm:$0xff]
    %v479 = vld [vmem:[%s1 + $0x4e0] sm:$0xff]
    %v480 = vld [vmem:[%s1 + $0x4e8] sm:$0xff]
    %v481 = vld [vmem:[%s1 + $0x4f0] sm:$0xff]
    %v482 = vld [vmem:[%s1 + $0x4f8] sm:$0xff]
    %v483 = vld [vmem:[%s1 + $0x500] sm:$0xff]
    %v484 = vld [vmem:[%s1 + $0x508] sm:$0xff]
    %v485 = vld [vmem:[%s1 + $0x510] sm:$0xff]
    %v486 = vld [vmem:[%s1 + $0x518] sm:$0xff]
    %v487 = vld [vmem:[%s1 + $0x520] sm:$0xff]
    %v488 = vld [vmem:[%s1 + $0x528] sm:$0xff]
    %v489 = vld [vmem:[%s1 + $0x530] sm:$0xff]
    %v490 = vld [vmem:[%s1 + $0x538] sm:$0xff]
    %v491 = vld [vmem:[%s1 + $0x540] sm:$0xff]
    %v492 = vld [vmem:[%s1 + $0x548] sm:$0xff]
    %v493 = vld [vmem:[%s1 + $0x550] sm:$0xff]
    %v494 = vld [vmem:[%s1 + $0x558] sm:$0xff]
    %v495 = vld [vmem:[%s1 + $0x560] sm:$0xff]
    %v496 = vld [vmem:[%s1 + $0x568] sm:$0xff]
    %v497 = vld [vmem:[%s1 + $0x570] sm:$0xff]
    %v498 = vld [vmem:[%s1 + $0x578] sm:$0xff]
    %v499 = vld [vmem:[%s1 + $0x580] sm:$0xff]
    %v500 = vld [vmem:[%s1 + $0x588] sm:$0xff]
    %v501 = vld [vmem:[%s1 + $0x590] sm:$0xff]
    %v502 = vld [vmem:[%s1 + $0x598] sm:$0xff]
    %v503 = vld [vmem:[%s1 + $0x5a0] sm:$0xff]
    %v504 = vld [vmem:[%s1 + $0x5a8] sm:$0xff]
    %v505 = vld [vmem:[%s1 + $0x5b0] sm:$0xff]
    %v506 = vld [vmem:[%s1 + $0x5b8] sm:$0xff]
    %v507 = vld [vmem:[%s1 + $0x5c0] sm:$0xff]
    %v508 = vld [vmem:[%s1 + $0x5c8] sm:$0xff]
    %v509 = vld [vmem:[%s1 + $0x5d0] sm:$0xff]
    %v510 = vld [vmem:[%s1 + $0x5d8] sm:$0xff]
    %v511 = vld [vmem:[%s1 + $0x5e0] sm:$0xff]
    %v512 = vld [vmem:[%s1 + $0x5e8] sm:$0xff]
    %v513 = vld [vmem:[%s1 + $0x5f0] sm:$0xff]
    %v514 = vld [vmem:[%s1 + $0x5f8] sm:$0xff]
    %v515 = vld [vmem:[%s1 + $0x600] sm:$0xff]
    %v516 = vld [vmem:[%s1 + $0x608] sm:$0xff]
    %v517 = vld [vmem:[%s1 + $0x610] sm:$0xff]
    %v518 = vld [vmem:[%s1 + $0x618] sm:$0xff]
    %v519 = vld [vmem:[%s1 + $0x620] sm:$0xff]
    %v520 = vld [vmem:[%s1 + $0x628] sm:$0xff]
    %v521 = vld [vmem:[%s1 + $0x630] sm:$0xff]
    %v522 = vld [vmem:[%s1 + $0x638] sm:$0xff]
    %v523 = vld [vmem:[%s1 + $0x640] sm:$0xff]
    %v524 = vld [vmem:[%s1 + $0x648] sm:$0xff]
    %v525 = vld [vmem:[%s1 + $0x650] sm:$0xff]
    %v526 = vld [vmem:[%s1 + $0x658] sm:$0xff]
    %v527 = vld [vmem:[%s1 + $0x660] sm:$0xff]
    %v528 = vld [vmem:[%s1 + $0x668] sm:$0xff]
    %v529 = vld [vmem:[%s1 + $0x670] sm:$0xff]
    %v530 = vld [vmem:[%s1 + $0x678] sm:$0xff]
    %v531 = vld [vmem:[%s1 + $0x680] sm:$0xff]
    %v532 = vld [vmem:[%s1 + $0x688] sm:$0xff]
    %v533 = vld [vmem:[%s1 + $0x690] sm:$0xff]
    %v534 = vld [vmem:[%s1 + $0x698] sm:$0xff]
    %v535 = vld [vmem:[%s1 + $0x6a0] sm:$0xff]
    %v536 = vld [vmem:[%s1 + $0x6a8] sm:$0xff]
    %v537 = vld [vmem:[%s1 + $0x6b0] sm:$0xff]
    %v538 = vld [vmem:[%s1 + $0x6b8] sm:$0xff]
    %v539 = vld [vmem:[%s1 + $0x6c0] sm:$0xff]
    %v540 = vld [vmem:[%s1 + $0x6c8] sm:$0xff]
    %v541 = vld [vmem:[%s1 + $0x6d0] sm:$0xff]
    %v542 = vld [vmem:[%s1 + $0x6d8] sm:$0xff]
    %v543 = vld [vmem:[%s1 + $0x6e0] sm:$0xff]
    %v544 = vld [vmem:[%s1 + $0x6e8] sm:$0xff]
    %v545 = vld [vmem:[%s1 + $0x6f0] sm:$0xff]
    %v546 = vld [vmem:[%s1 + $0x6f8] sm:$0xff]
    %v547 = vld [vmem:[%s1 + $0x700] sm:$0xff]
    %v548 = vld [vmem:[%s1 + $0x708] sm:$0xff]
    %v549 = vld [vmem:[%s1 + $0x710] sm:$0xff]
    %v550 = vld [vmem:[%s1 + $0x718] sm:$0xff]
    %v551 = vld [vmem:[%s1 + $0x720] sm:$0xff]
    %v552 = vld [vmem:[%s1 + $0x728] sm:$0xff]
    %v553 = vld [vmem:[%s1 + $0x730] sm:$0xff]
    %v554 = vld [vmem:[%s1 + $0x738] sm:$0xff]
    %v555 = vld [vmem:[%s1 + $0x740] sm:$0xff]
    %v556 = vld [vmem:[%s1 + $0x748] sm:$0xff]
    %v557 = vld [vmem:[%s1 + $0x750] sm:$0xff]
    %v558 = vld [vmem:[%s1 + $0x758] sm:$0xff]
    %v559 = vld [vmem:[%s1 + $0x760] sm:$0xff]
    %v560 = vld [vmem:[%s1 + $0x768] sm:$0xff]
    %v561 = vld [vmem:[%s1 + $0x770] sm:$0xff]
    %v562 = vld [vmem:[%s1 + $0x778] sm:$0xff]
    %v563 = vld [vmem:[%s1 + $0x780] sm:$0xff]
    %v564 = vld [vmem:[%s1 + $0x788] sm:$0xff]
    %v565 = vld [vmem:[%s1 + $0x790] sm:$0xff]
    %v566 = vld [vmem:[%s1 + $0x798] sm:$0xff]
    %v567 = vld [vmem:[%s1 + $0x7a0] sm:$0xff]
    %v568 = vld [vmem:[%s1 + $0x7a8] sm:$0xff]
    %v569 = vld [vmem:[%s1 + $0x7b0] sm:$0xff]
    %v570 = vld [vmem:[%s1 + $0x7b8] sm:$0xff]
    %v571 = vld [vmem:[%s1 + $0x7c0] sm:$0xff]
    %v572 = vld [vmem:[%s1 + $0x7c8] sm:$0xff]
    %v573 = vld [vmem:[%s1 + $0x7d0] sm:$0xff]
    %v574 = vld [vmem:[%s1 + $0x7d8] sm:$0xff]
    %v575 = vld [vmem:[%s1 + $0x7e0] sm:$0xff]
    %v576 = vld [vmem:[%s1 + $0x7e8] sm:$0xff]
    %v577 = vld [vmem:[%s1 + $0x7f0] sm:$0xff]
    %v578 = vld [vmem:[%s1 + $0x7f8] sm:$0xff]
    %v579 = vld [vmem:[%s1 + $0x800] sm:$0xff]
    %v580 = vld [vmem:[%s1 + $0x808] sm:$0xff]
    %v581 = vld [vmem:[%s1 + $0x810] sm:$0xff]
    %v582 = vld [vmem:[%s1 + $0x818] sm:$0xff]
    %v583 = vld [vmem:[%s1 + $0x820] sm:$0xff]
    %v584 = vld [vmem:[%s1 + $0x828] sm:$0xff]
    %v585 = vld [vmem:[%s1 + $0x830] sm:$0xff]
    %v586 = vld [vmem:[%s1 + $0x838] sm:$0xff]
    %vm587 = vcmask 261120
    %v589 = vsel %vm587, %v133, 0
    %v592 = vsel %vm587, %v142, 0
    %v595 = vsel %vm587, %v151, 0
    %v598 = vsel %vm587, %v160, 0
    %v601 = vsel %vm587, %v169, 0
    %v604 = vsel %vm587, %v178, 0
    %v607 = vsel %vm587, %v187, 0
    %v610 = vsel %vm587, %v196, 0
    %v613 = vsel %vm587, %v205, 0
    %v616 = vsel %vm587, %v214, 0
    %v619 = vsel %vm587, %v223, 0
    %v622 = vsel %vm587, %v232, 0
    %v625 = vsel %vm587, %v241, 0
    %v628 = vsel %vm587, %v250, 0
    %v631 = vsel %vm587, %v259, 0
    %v634 = vsel %vm587, %v268, 0
    %v637 = vsel %vm587, %v277, 0
    %v640 = vsel %vm587, %v286, 0
    %v643 = vsel %vm587, %v295, 0
    %v646 = vsel %vm587, %v304, 0
    %v649 = vsel %vm587, %v313, 0
    %v652 = vsel %vm587, %v322, 0
    %654 = vmatprep.subr.mxu0 %v324
    %655 = vmatpush1.msra.mxu0 %v323
    %656 = vmatprep.subr.mxu0 %v326
    %657 = vmatpush1.msra.mxu0 %v325
    %658 = vmatprep.subr.mxu0 %v328
    %659 = vmatpush1.msra.mxu0 %v327
    %660 = vmatprep.subr.mxu0 %v330
    %661 = vmatpush1.msra.mxu0 %v329
    %662 = vmatprep.subr.mxu0 %v332
    %663 = vmatpush1.msra.mxu0 %v331
    %664 = vmatprep.subr.mxu0 %v334
    %665 = vmatpush1.msra.mxu0 %v333
    %666 = vmatprep.subr.mxu0 %v336
    %667 = vmatpush1.msra.mxu0 %v335
    %668 = vmatprep.subr.mxu0 %v338
    %669 = vmatpush1.msra.mxu0 %v337
    %670 = vmatprep.subr.mxu0 %v340
    %671 = vmatpush1.msra.mxu0 %v339
    %672 = vmatprep.subr.mxu0 %v342
    %673 = vmatpush1.msra.mxu0 %v341
    %674 = vmatprep.subr.mxu0 %v344
    %675 = vmatpush1.msra.mxu0 %v343
    %676 = vmatprep.subr.mxu0 %v346
    %677 = vmatpush1.msra.mxu0 %v345
    %678 = vmatprep.subr.mxu0 %v348
    %679 = vmatpush1.msra.mxu0 %v347
    %680 = vmatprep.subr.mxu0 %v350
    %681 = vmatpush1.msra.mxu0 %v349
    %682 = vmatprep.subr.mxu0 %v352
    %683 = vmatpush1.msra.mxu0 %v351
    %684 = vmatprep.subr.mxu0 %v354
    %685 = vmatpush1.msra.mxu0 %v353
    %686 = vmatprep.subr.mxu0 %v356
    %687 = vmatpush1.msra.mxu0 %v355
    %688 = vmatprep.subr.mxu0 %v358
    %689 = vmatpush1.msra.mxu0 %v357
    %690 = vmatprep.subr.mxu0 %v360
    %691 = vmatpush1.msra.mxu0 %v359
    %692 = vmatprep.subr.mxu0 %v362
    %693 = vmatpush1.msra.mxu0 %v361
    %694 = vmatprep.subr.mxu0 %v364
    %695 = vmatpush1.msra.mxu0 %v363
    %696 = vmatprep.subr.mxu0 %v366
    %697 = vmatpush1.msra.mxu0 %v365
    %698 = vmatprep.subr.mxu0 %v368
    %699 = vmatpush1.msra.mxu0 %v367
    %700 = vmatprep.subr.mxu0 %v370
    %701 = vmatpush1.msra.mxu0 %v369
    %702 = vmatprep.subr.mxu0 %v372
    %703 = vmatpush1.msra.mxu0 %v371
    %704 = vmatprep.subr.mxu0 %v374
    %705 = vmatpush1.msra.mxu0 %v373
    %706 = vmatprep.subr.mxu0 %v376
    %707 = vmatpush1.msra.mxu0 %v375
    %708 = vmatprep.subr.mxu0 %v378
    %709 = vmatpush1.msra.mxu0 %v377
    %710 = vmatprep.subr.mxu0 %v380
    %711 = vmatpush1.msra.mxu0 %v379
    %712 = vmatprep.subr.mxu0 %v382
    %713 = vmatpush1.msra.mxu0 %v381
    %714 = vmatprep.subr.mxu0 %v384
    %715 = vmatpush1.msra.mxu0 %v383
    %716 = vmatprep.subr.mxu0 %v386
    %717 = vmatpush1.msra.mxu0 %v385
    %718 = vmatprep.mubr.f32.mxu0 %v126
    %719 = vmatmul.mubr.f32.gmra.mrb[0].mxu0 %v125
    %v720 = vpop.f32.mrb[0].mxu0
    %v721 = vadd.f32 0.0, %v720
    %v722 = vpop.f32.mrb[0].mxu0
    %v723 = vadd.f32 0.0, %v722
    %724 = vmatprep.mubr.f32.mxu0 %v135
    %725 = vmatmul.mubr.f32.gmra.mrb[0].mxu0 %v134
    %v726 = vpop.f32.mrb[0].mxu0
    %v727 = vadd.f32 0.0, %v726
    %v728 = vpop.f32.mrb[0].mxu0
    %v729 = vadd.f32 0.0, %v728
    %730 = vmatprep.mubr.f32.mxu0 %v144
    %731 = vmatmul.mubr.f32.gmra.mrb[0].mxu0 %v143
    %v732 = vpop.f32.mrb[0].mxu0
    %v733 = vadd.f32 0.0, %v732
    %v734 = vpop.f32.mrb[0].mxu0
    %v735 = vadd.f32 0.0, %v734
    %736 = vmatprep.mubr.f32.mxu0 %v153
    %737 = vmatmul.mubr.f32.gmra.mrb[0].mxu0 %v152
    %v738 = vpop.f32.mrb[0].mxu0
    %v739 = vadd.f32 0.0, %v738
    %v740 = vpop.f32.mrb[0].mxu0
    %v741 = vadd.f32 0.0, %v740
    %742 = vmatprep.mubr.f32.mxu0 %v162
    %743 = vmatmul.mubr.f32.gmra.mrb[0].mxu0 %v161
    %v744 = vpop.f32.mrb[0].mxu0
    %v745 = vadd.f32 0.0, %v744
    %v746 = vpop.f32.mrb[0].mxu0
    %v747 = vadd.f32 0.0, %v746
    %748 = vmatprep.mubr.f32.mxu0 %v171
    %749 = vmatmul.mubr.f32.gmra.mrb[0].mxu0 %v170
    %v750 = vpop.f32.mrb[0].mxu0
    %v751 = vadd.f32 0.0, %v750
    %v752 = vpop.f32.mrb[0].mxu0
    %v753 = vadd.f32 0.0, %v752
    %754 = vmatprep.mubr.f32.mxu0 %v180
    %755 = vmatmul.mubr.f32.gmra.mrb[0].mxu0 %v179
    %v756 = vpop.f32.mrb[0].mxu0
    %v757 = vadd.f32 0.0, %v756
    %v758 = vpop.f32.mrb[0].mxu0
    %v759 = vadd.f32 0.0, %v758
    %760 = vmatprep.mubr.f32.mxu0 %v189
    %761 = vmatmul.mubr.f32.gmra.mrb[0].mxu0 %v188
    %v762 = vpop.f32.mrb[0].mxu0
    %v763 = vadd.f32 0.0, %v762
    %v764 = vpop.f32.mrb[0].mxu0
    %v765 = vadd.f32 0.0, %v764
    %766 = vmatprep.mubr.f32.mxu0 %v198
    %767 = vmatmul.mubr.f32.gmra.mrb[0].mxu0 %v197
    %v768 = vpop.f32.mrb[0].mxu0
    %v769 = vadd.f32 0.0, %v768
    %v770 = vpop.f32.mrb[0].mxu0
    %v771 = vadd.f32 0.0, %v770
    %772 = vmatprep.mubr.f32.mxu0 %v207
    %773 = vmatmul.mubr.f32.gmra.mrb[0].mxu0 %v206
    %v774 = vpop.f32.mrb[0].mxu0
    %v775 = vadd.f32 0.0, %v774
    %v776 = vpop.f32.mrb[0].mxu0
    %v777 = vadd.f32 0.0, %v776
    %778 = vmatprep.mubr.f32.mxu0 %v216
    %779 = vmatmul.mubr.f32.gmra.mrb[0].mxu0 %v215
    %v780 = vpop.f32.mrb[0].mxu0
    %v781 = vadd.f32 0.0, %v780
    %v782 = vpop.f32.mrb[0].mxu0
    %v783 = vadd.f32 0.0, %v782
    %784 = vmatprep.mubr.f32.mxu0 %v225
    %785 = vmatmul.mubr.f32.gmra.mrb[0].mxu0 %v224
    %v786 = vpop.f32.mrb[0].mxu0
    %v787 = vadd.f32 0.0, %v786
    %v788 = vpop.f32.mrb[0].mxu0
    %v789 = vadd.f32 0.0, %v788
    %790 = vmatprep.mubr.f32.mxu0 %v234
    %791 = vmatmul.mubr.f32.gmra.mrb[0].mxu0 %v233
    %v792 = vpop.f32.mrb[0].mxu0
    %v793 = vadd.f32 0.0, %v792
    %v794 = vpop.f32.mrb[0].mxu0
    %v795 = vadd.f32 0.0, %v794
    %796 = vmatprep.mubr.f32.mxu0 %v243
    %797 = vmatmul.mubr.f32.gmra.mrb[0].mxu0 %v242
    %v798 = vpop.f32.mrb[0].mxu0
    %v799 = vadd.f32 0.0, %v798
    %v800 = vpop.f32.mrb[0].mxu0
    %v801 = vadd.f32 0.0, %v800
    %802 = vmatprep.mubr.f32.mxu0 %v252
    %803 = vmatmul.mubr.f32.gmra.mrb[0].mxu0 %v251
    %v804 = vpop.f32.mrb[0].mxu0
    %v805 = vadd.f32 0.0, %v804
    %v806 = vpop.f32.mrb[0].mxu0
    %v807 = vadd.f32 0.0, %v806
    %808 = vmatprep.mubr.f32.mxu0 %v261
    %809 = vmatmul.mubr.f32.gmra.mrb[0].mxu0 %v260
    %v810 = vpop.f32.mrb[0].mxu0
    %v811 = vadd.f32 0.0, %v810
    %v812 = vpop.f32.mrb[0].mxu0
    %v813 = vadd.f32 0.0, %v812
    %814 = vmatprep.mubr.f32.mxu0 %v270
    %815 = vmatmul.mubr.f32.gmra.mrb[0].mxu0 %v269
    %v816 = vpop.f32.mrb[0].mxu0
    %v817 = vadd.f32 0.0, %v816
    %v818 = vpop.f32.mrb[0].mxu0
    %v819 = vadd.f32 0.0, %v818
    %820 = vmatprep.mubr.f32.mxu0 %v279
    %821 = vmatmul.mubr.f32.gmra.mrb[0].mxu0 %v278
    %v822 = vpop.f32.mrb[0].mxu0
    %v823 = vadd.f32 0.0, %v822
    %v824 = vpop.f32.mrb[0].mxu0
    %v825 = vadd.f32 0.0, %v824
    %826 = vmatprep.mubr.f32.mxu0 %v288
    %827 = vmatmul.mubr.f32.gmra.mrb[0].mxu0 %v287
    %v828 = vpop.f32.mrb[0].mxu0
    %v829 = vadd.f32 0.0, %v828
    %v830 = vpop.f32.mrb[0].mxu0
    %v831 = vadd.f32 0.0, %v830
    %832 = vmatprep.mubr.f32.mxu0 %v297
    %833 = vmatmul.mubr.f32.gmra.mrb[0].mxu0 %v296
    %v834 = vpop.f32.mrb[0].mxu0
    %v835 = vadd.f32 0.0, %v834
    %v836 = vpop.f32.mrb[0].mxu0
    %v837 = vadd.f32 0.0, %v836
    %838 = vmatprep.mubr.f32.mxu0 %v306
    %839 = vmatmul.mubr.f32.gmra.mrb[0].mxu0 %v305
    %v840 = vpop.f32.mrb[0].mxu0
    %v841 = vadd.f32 0.0, %v840
    %v842 = vpop.f32.mrb[0].mxu0
    %v843 = vadd.f32 0.0, %v842
    %844 = vmatprep.mubr.f32.mxu0 %v315
    %845 = vmatmul.mubr.f32.gmra.mrb[0].mxu0 %v314
    %v846 = vpop.f32.mrb[0].mxu0
    %v847 = vadd.f32 0.0, %v846
    %v848 = vpop.f32.mrb[0].mxu0
    %v849 = vadd.f32 0.0, %v848
    %850 = vdwg.mxu0
    %851 = vmatprep.subr.mxu0 %v388
    %852 = vmatpush1.msra.mxu0 %v387
    %853 = vmatprep.subr.mxu0 %v390
    %854 = vmatpush1.msra.mxu0 %v389
    %855 = vmatprep.subr.mxu0 %v392
    %856 = vmatpush1.msra.mxu0 %v391
    %857 = vmatprep.subr.mxu0 %v394
    %858 = vmatpush1.msra.mxu0 %v393
    %859 = vmatprep.subr.mxu0 %v396
    %860 = vmatpush1.msra.mxu0 %v395
    %861 = vmatprep.subr.mxu0 %v398
    %862 = vmatpush1.msra.mxu0 %v397
    %863 = vmatprep.subr.mxu0 %v400
    %864 = vmatpush1.msra.mxu0 %v399
    %865 = vmatprep.subr.mxu0 %v402
    %866 = vmatpush1.msra.mxu0 %v401
    %867 = vmatprep.subr.mxu0 %v404
    %868 = vmatpush1.msra.mxu0 %v403
    %869 = vmatprep.subr.mxu0 %v406
    %870 = vmatpush1.msra.mxu0 %v405
    %871 = vmatprep.subr.mxu0 %v408
    %872 = vmatpush1.msra.mxu0 %v407
    %873 = vmatprep.subr.mxu0 %v410
    %874 = vmatpush1.msra.mxu0 %v409
    %875 = vmatprep.subr.mxu0 %v412
    %876 = vmatpush1.msra.mxu0 %v411
    %877 = vmatprep.subr.mxu0 %v414
    %878 = vmatpush1.msra.mxu0 %v413
    %879 = vmatprep.subr.mxu0 %v416
    %880 = vmatpush1.msra.mxu0 %v415
    %881 = vmatprep.subr.mxu0 %v418
    %882 = vmatpush1.msra.mxu0 %v417
    %883 = vmatprep.subr.mxu0 %v420
    %884 = vmatpush1.msra.mxu0 %v419
    %885 = vmatprep.subr.mxu0 %v422
    %886 = vmatpush1.msra.mxu0 %v421
    %887 = vmatprep.subr.mxu0 %v424
    %888 = vmatpush1.msra.mxu0 %v423
    %889 = vmatprep.subr.mxu0 %v426
    %890 = vmatpush1.msra.mxu0 %v425
    %891 = vmatprep.subr.mxu0 %v428
    %892 = vmatpush1.msra.mxu0 %v427
    %893 = vmatprep.subr.mxu0 %v430
    %894 = vmatpush1.msra.mxu0 %v429
    %895 = vmatprep.subr.mxu0 %v432
    %896 = vmatpush1.msra.mxu0 %v431
    %897 = vmatprep.subr.mxu0 %v434
    %898 = vmatpush1.msra.mxu0 %v433
    %899 = vmatprep.subr.mxu0 %v436
    %900 = vmatpush1.msra.mxu0 %v435
    %901 = vmatprep.subr.mxu0 %v438
    %902 = vmatpush1.msra.mxu0 %v437
    %903 = vmatprep.subr.mxu0 %v440
    %904 = vmatpush1.msra.mxu0 %v439
    %905 = vmatprep.subr.mxu0 %v442
    %906 = vmatpush1.msra.mxu0 %v441
    %907 = vmatprep.subr.mxu0 %v444
    %908 = vmatpush1.msra.mxu0 %v443
    %909 = vmatprep.subr.mxu0 %v446
    %910 = vmatpush1.msra.mxu0 %v445
    %911 = vmatprep.subr.mxu0 %v448
    %912 = vmatpush1.msra.mxu0 %v447
    %913 = vmatprep.subr.mxu0 %v450
    %914 = vmatpush1.msra.mxu0 %v449
    %915 = vmatprep.mubr.f32.mxu0 %v128
    %916 = vmatmul.mubr.f32.gmra.mrb[0].mxu0 %v127
    %v917 = vpop.f32.mrb[0].mxu0
    %v918 = vadd.f32 %v721, %v917
    %v919 = vpop.f32.mrb[0].mxu0
    %v920 = vadd.f32 %v723, %v919
    %921 = vmatprep.mubr.f32.mxu0 %v137
    %922 = vmatmul.mubr.f32.gmra.mrb[0].mxu0 %v136
    %v923 = vpop.f32.mrb[0].mxu0
    %v924 = vadd.f32 %v727, %v923
    %v925 = vpop.f32.mrb[0].mxu0
    %v926 = vadd.f32 %v729, %v925
    %927 = vmatprep.mubr.f32.mxu0 %v146
    %928 = vmatmul.mubr.f32.gmra.mrb[0].mxu0 %v145
    %v929 = vpop.f32.mrb[0].mxu0
    %v930 = vadd.f32 %v733, %v929
    %v931 = vpop.f32.mrb[0].mxu0
    %v932 = vadd.f32 %v735, %v931
    %933 = vmatprep.mubr.f32.mxu0 %v155
    %934 = vmatmul.mubr.f32.gmra.mrb[0].mxu0 %v154
    %v935 = vpop.f32.mrb[0].mxu0
    %v936 = vadd.f32 %v739, %v935
    %v937 = vpop.f32.mrb[0].mxu0
    %v938 = vadd.f32 %v741, %v937
    %939 = vmatprep.mubr.f32.mxu0 %v164
    %940 = vmatmul.mubr.f32.gmra.mrb[0].mxu0 %v163
    %v941 = vpop.f32.mrb[0].mxu0
    %v942 = vadd.f32 %v745, %v941
    %v943 = vpop.f32.mrb[0].mxu0
    %v944 = vadd.f32 %v747, %v943
    %945 = vmatprep.mubr.f32.mxu0 %v173
    %946 = vmatmul.mubr.f32.gmra.mrb[0].mxu0 %v172
    %v947 = vpop.f32.mrb[0].mxu0
    %v948 = vadd.f32 %v751, %v947
    %v949 = vpop.f32.mrb[0].mxu0
    %v950 = vadd.f32 %v753, %v949
    %951 = vmatprep.mubr.f32.mxu0 %v182
    %952 = vmatmul.mubr.f32.gmra.mrb[0].mxu0 %v181
    %v953 = vpop.f32.mrb[0].mxu0
    %v954 = vadd.f32 %v757, %v953
    %v955 = vpop.f32.mrb[0].mxu0
    %v956 = vadd.f32 %v759, %v955
    %957 = vmatprep.mubr.f32.mxu0 %v191
    %958 = vmatmul.mubr.f32.gmra.mrb[0].mxu0 %v190
    %v959 = vpop.f32.mrb[0].mxu0
    %v960 = vadd.f32 %v763, %v959
    %v961 = vpop.f32.mrb[0].mxu0
    %v962 = vadd.f32 %v765, %v961
    %963 = vmatprep.mubr.f32.mxu0 %v200
    %964 = vmatmul.mubr.f32.gmra.mrb[0].mxu0 %v199
    %v965 = vpop.f32.mrb[0].mxu0
    %v966 = vadd.f32 %v769, %v965
    %v967 = vpop.f32.mrb[0].mxu0
    %v968 = vadd.f32 %v771, %v967
    %969 = vmatprep.mubr.f32.mxu0 %v209
    %970 = vmatmul.mubr.f32.gmra.mrb[0].mxu0 %v208
    %v971 = vpop.f32.mrb[0].mxu0
    %v972 = vadd.f32 %v775, %v971
    %v973 = vpop.f32.mrb[0].mxu0
    %v974 = vadd.f32 %v777, %v973
    %975 = vmatprep.mubr.f32.mxu0 %v218
    %976 = vmatmul.mubr.f32.gmra.mrb[0].mxu0 %v217
    %v977 = vpop.f32.mrb[0].mxu0
    %v978 = vadd.f32 %v781, %v977
    %v979 = vpop.f32.mrb[0].mxu0
    %v980 = vadd.f32 %v783, %v979
    %981 = vmatprep.mubr.f32.mxu0 %v227
    %982 = vmatmul.mubr.f32.gmra.mrb[0].mxu0 %v226
    %v983 = vpop.f32.mrb[0].mxu0
    %v984 = vadd.f32 %v787, %v983
    %v985 = vpop.f32.mrb[0].mxu0
    %v986 = vadd.f32 %v789, %v985
    %987 = vmatprep.mubr.f32.mxu0 %v236
    %988 = vmatmul.mubr.f32.gmra.mrb[0].mxu0 %v235
    %v989 = vpop.f32.mrb[0].mxu0
    %v990 = vadd.f32 %v793, %v989
    %v991 = vpop.f32.mrb[0].mxu0
    %v992 = vadd.f32 %v795, %v991
    %993 = vmatprep.mubr.f32.mxu0 %v245
    %994 = vmatmul.mubr.f32.gmra.mrb[0].mxu0 %v244
    %v995 = vpop.f32.mrb[0].mxu0
    %v996 = vadd.f32 %v799, %v995
    %v997 = vpop.f32.mrb[0].mxu0
    %v998 = vadd.f32 %v801, %v997
    %999 = vmatprep.mubr.f32.mxu0 %v254
    %1000 = vmatmul.mubr.f32.gmra.mrb[0].mxu0 %v253
    %v1001 = vpop.f32.mrb[0].mxu0
    %v1002 = vadd.f32 %v805, %v1001
    %v1003 = vpop.f32.mrb[0].mxu0
    %v1004 = vadd.f32 %v807, %v1003
    %1005 = vmatprep.mubr.f32.mxu0 %v263
    %1006 = vmatmul.mubr.f32.gmra.mrb[0].mxu0 %v262
    %v1007 = vpop.f32.mrb[0].mxu0
    %v1008 = vadd.f32 %v811, %v1007
    %v1009 = vpop.f32.mrb[0].mxu0
    %v1010 = vadd.f32 %v813, %v1009
    %1011 = vmatprep.mubr.f32.mxu0 %v272
    %1012 = vmatmul.mubr.f32.gmra.mrb[0].mxu0 %v271
    %v1013 = vpop.f32.mrb[0].mxu0
    %v1014 = vadd.f32 %v817, %v1013
    %v1015 = vpop.f32.mrb[0].mxu0
    %v1016 = vadd.f32 %v819, %v1015
    %1017 = vmatprep.mubr.f32.mxu0 %v281
    %1018 = vmatmul.mubr.f32.gmra.mrb[0].mxu0 %v280
    %v1019 = vpop.f32.mrb[0].mxu0
    %v1020 = vadd.f32 %v823, %v1019
    %v1021 = vpop.f32.mrb[0].mxu0
    %v1022 = vadd.f32 %v825, %v1021
    %1023 = vmatprep.mubr.f32.mxu0 %v290
    %1024 = vmatmul.mubr.f32.gmra.mrb[0].mxu0 %v289
    %v1025 = vpop.f32.mrb[0].mxu0
    %v1026 = vadd.f32 %v829, %v1025
    %v1027 = vpop.f32.mrb[0].mxu0
    %v1028 = vadd.f32 %v831, %v1027
    %1029 = vmatprep.mubr.f32.mxu0 %v299
    %1030 = vmatmul.mubr.f32.gmra.mrb[0].mxu0 %v298
    %v1031 = vpop.f32.mrb[0].mxu0
    %v1032 = vadd.f32 %v835, %v1031
    %v1033 = vpop.f32.mrb[0].mxu0
    %v1034 = vadd.f32 %v837, %v1033
    %1035 = vmatprep.mubr.f32.mxu0 %v308
    %1036 = vmatmul.mubr.f32.gmra.mrb[0].mxu0 %v307
    %v1037 = vpop.f32.mrb[0].mxu0
    %v1038 = vadd.f32 %v841, %v1037
    %v1039 = vpop.f32.mrb[0].mxu0
    %v1040 = vadd.f32 %v843, %v1039
    %1041 = vmatprep.mubr.f32.mxu0 %v317
    %1042 = vmatmul.mubr.f32.gmra.mrb[0].mxu0 %v316
    %v1043 = vpop.f32.mrb[0].mxu0
    %v1044 = vadd.f32 %v847, %v1043
    %v1045 = vpop.f32.mrb[0].mxu0
    %v1046 = vadd.f32 %v849, %v1045
    %1047 = vdwg.mxu0
    %1048 = vmatprep.subr.mxu0 %v452
    %1049 = vmatpush1.msra.mxu0 %v451
    %1050 = vmatprep.subr.mxu0 %v454
    %1051 = vmatpush1.msra.mxu0 %v453
    %1052 = vmatprep.subr.mxu0 %v456
    %1053 = vmatpush1.msra.mxu0 %v455
    %1054 = vmatprep.subr.mxu0 %v458
    %1055 = vmatpush1.msra.mxu0 %v457
    %1056 = vmatprep.subr.mxu0 %v460
    %1057 = vmatpush1.msra.mxu0 %v459
    %1058 = vmatprep.subr.mxu0 %v462
    %1059 = vmatpush1.msra.mxu0 %v461
    %1060 = vmatprep.subr.mxu0 %v464
    %1061 = vmatpush1.msra.mxu0 %v463
    %1062 = vmatprep.subr.mxu0 %v466
    %1063 = vmatpush1.msra.mxu0 %v465
    %1064 = vmatprep.subr.mxu0 %v468
    %1065 = vmatpush1.msra.mxu0 %v467
    %1066 = vmatprep.subr.mxu0 %v470
    %1067 = vmatpush1.msra.mxu0 %v469
    %1068 = vmatprep.subr.mxu0 %v472
    %1069 = vmatpush1.msra.mxu0 %v471
    %1070 = vmatprep.subr.mxu0 %v474
    %1071 = vmatpush1.msra.mxu0 %v473
    %1072 = vmatprep.subr.mxu0 %v476
    %1073 = vmatpush1.msra.mxu0 %v475
    %1074 = vmatprep.subr.mxu0 %v478
    %1075 = vmatpush1.msra.mxu0 %v477
    %1076 = vmatprep.subr.mxu0 %v480
    %1077 = vmatpush1.msra.mxu0 %v479
    %1078 = vmatprep.subr.mxu0 %v482
    %1079 = vmatpush1.msra.mxu0 %v481
    %1080 = vmatprep.subr.mxu0 %v484
    %1081 = vmatpush1.msra.mxu0 %v483
    %1082 = vmatprep.subr.mxu0 %v486
    %1083 = vmatpush1.msra.mxu0 %v485
    %1084 = vmatprep.subr.mxu0 %v488
    %1085 = vmatpush1.msra.mxu0 %v487
    %1086 = vmatprep.subr.mxu0 %v490
    %1087 = vmatpush1.msra.mxu0 %v489
    %1088 = vmatprep.subr.mxu0 %v492
    %1089 = vmatpush1.msra.mxu0 %v491
    %1090 = vmatprep.subr.mxu0 %v494
    %1091 = vmatpush1.msra.mxu0 %v493
    %1092 = vmatprep.subr.mxu0 %v496
    %1093 = vmatpush1.msra.mxu0 %v495
    %1094 = vmatprep.subr.mxu0 %v498
    %1095 = vmatpush1.msra.mxu0 %v497
    %1096 = vmatprep.subr.mxu0 %v500
    %1097 = vmatpush1.msra.mxu0 %v499
    %1098 = vmatprep.subr.mxu0 %v502
    %1099 = vmatpush1.msra.mxu0 %v501
    %1100 = vmatprep.subr.mxu0 %v504
    %1101 = vmatpush1.msra.mxu0 %v503
    %1102 = vmatprep.subr.mxu0 %v506
    %1103 = vmatpush1.msra.mxu0 %v505
    %1104 = vmatprep.subr.mxu0 %v508
    %1105 = vmatpush1.msra.mxu0 %v507
    %1106 = vmatprep.subr.mxu0 %v510
    %1107 = vmatpush1.msra.mxu0 %v509
    %1108 = vmatprep.subr.mxu0 %v512
    %1109 = vmatpush1.msra.mxu0 %v511
    %1110 = vmatprep.subr.mxu0 %v514
    %1111 = vmatpush1.msra.mxu0 %v513
    %1112 = vmatprep.mubr.f32.mxu0 %v130
    %1113 = vmatmul.mubr.f32.gmra.mrb[0].mxu0 %v129
    %v1114 = vpop.f32.mrb[0].mxu0
    %v1115 = vadd.f32 %v918, %v1114
    %v1116 = vpop.f32.mrb[0].mxu0
    %v1117 = vadd.f32 %v920, %v1116
    %1118 = vmatprep.mubr.f32.mxu0 %v139
    %1119 = vmatmul.mubr.f32.gmra.mrb[0].mxu0 %v138
    %v1120 = vpop.f32.mrb[0].mxu0
    %v1121 = vadd.f32 %v924, %v1120
    %v1122 = vpop.f32.mrb[0].mxu0
    %v1123 = vadd.f32 %v926, %v1122
    %1124 = vmatprep.mubr.f32.mxu0 %v148
    %1125 = vmatmul.mubr.f32.gmra.mrb[0].mxu0 %v147
    %v1126 = vpop.f32.mrb[0].mxu0
    %v1127 = vadd.f32 %v930, %v1126
    %v1128 = vpop.f32.mrb[0].mxu0
    %v1129 = vadd.f32 %v932, %v1128
    %1130 = vmatprep.mubr.f32.mxu0 %v157
    %1131 = vmatmul.mubr.f32.gmra.mrb[0].mxu0 %v156
    %v1132 = vpop.f32.mrb[0].mxu0
    %v1133 = vadd.f32 %v936, %v1132
    %v1134 = vpop.f32.mrb[0].mxu0
    %v1135 = vadd.f32 %v938, %v1134
    %1136 = vmatprep.mubr.f32.mxu0 %v166
    %1137 = vmatmul.mubr.f32.gmra.mrb[0].mxu0 %v165
    %v1138 = vpop.f32.mrb[0].mxu0
    %v1139 = vadd.f32 %v942, %v1138
    %v1140 = vpop.f32.mrb[0].mxu0
    %v1141 = vadd.f32 %v944, %v1140
    %1142 = vmatprep.mubr.f32.mxu0 %v175
    %1143 = vmatmul.mubr.f32.gmra.mrb[0].mxu0 %v174
    %v1144 = vpop.f32.mrb[0].mxu0
    %v1145 = vadd.f32 %v948, %v1144
    %v1146 = vpop.f32.mrb[0].mxu0
    %v1147 = vadd.f32 %v950, %v1146
    %1148 = vmatprep.mubr.f32.mxu0 %v184
    %1149 = vmatmul.mubr.f32.gmra.mrb[0].mxu0 %v183
    %v1150 = vpop.f32.mrb[0].mxu0
    %v1151 = vadd.f32 %v954, %v1150
    %v1152 = vpop.f32.mrb[0].mxu0
    %v1153 = vadd.f32 %v956, %v1152
    %1154 = vmatprep.mubr.f32.mxu0 %v193
    %1155 = vmatmul.mubr.f32.gmra.mrb[0].mxu0 %v192
    %v1156 = vpop.f32.mrb[0].mxu0
    %v1157 = vadd.f32 %v960, %v1156
    %v1158 = vpop.f32.mrb[0].mxu0
    %v1159 = vadd.f32 %v962, %v1158
    %1160 = vmatprep.mubr.f32.mxu0 %v202
    %1161 = vmatmul.mubr.f32.gmra.mrb[0].mxu0 %v201
    %v1162 = vpop.f32.mrb[0].mxu0
    %v1163 = vadd.f32 %v966, %v1162
    %v1164 = vpop.f32.mrb[0].mxu0
    %v1165 = vadd.f32 %v968, %v1164
    %1166 = vmatprep.mubr.f32.mxu0 %v211
    %1167 = vmatmul.mubr.f32.gmra.mrb[0].mxu0 %v210
    %v1168 = vpop.f32.mrb[0].mxu0
    %v1169 = vadd.f32 %v972, %v1168
    %v1170 = vpop.f32.mrb[0].mxu0
    %v1171 = vadd.f32 %v974, %v1170
    %1172 = vmatprep.mubr.f32.mxu0 %v220
    %1173 = vmatmul.mubr.f32.gmra.mrb[0].mxu0 %v219
    %v1174 = vpop.f32.mrb[0].mxu0
    %v1175 = vadd.f32 %v978, %v1174
    %v1176 = vpop.f32.mrb[0].mxu0
    %v1177 = vadd.f32 %v980, %v1176
    %1178 = vmatprep.mubr.f32.mxu0 %v229
    %1179 = vmatmul.mubr.f32.gmra.mrb[0].mxu0 %v228
    %v1180 = vpop.f32.mrb[0].mxu0
    %v1181 = vadd.f32 %v984, %v1180
    %v1182 = vpop.f32.mrb[0].mxu0
    %v1183 = vadd.f32 %v986, %v1182
    %1184 = vmatprep.mubr.f32.mxu0 %v238
    %1185 = vmatmul.mubr.f32.gmra.mrb[0].mxu0 %v237
    %v1186 = vpop.f32.mrb[0].mxu0
    %v1187 = vadd.f32 %v990, %v1186
    %v1188 = vpop.f32.mrb[0].mxu0
    %v1189 = vadd.f32 %v992, %v1188
    %1190 = vmatprep.mubr.f32.mxu0 %v247
    %1191 = vmatmul.mubr.f32.gmra.mrb[0].mxu0 %v246
    %v1192 = vpop.f32.mrb[0].mxu0
    %v1193 = vadd.f32 %v996, %v1192
    %v1194 = vpop.f32.mrb[0].mxu0
    %v1195 = vadd.f32 %v998, %v1194
    %1196 = vmatprep.mubr.f32.mxu0 %v256
    %1197 = vmatmul.mubr.f32.gmra.mrb[0].mxu0 %v255
    %v1198 = vpop.f32.mrb[0].mxu0
    %v1199 = vadd.f32 %v1002, %v1198
    %v1200 = vpop.f32.mrb[0].mxu0
    %v1201 = vadd.f32 %v1004, %v1200
    %1202 = vmatprep.mubr.f32.mxu0 %v265
    %1203 = vmatmul.mubr.f32.gmra.mrb[0].mxu0 %v264
    %v1204 = vpop.f32.mrb[0].mxu0
    %v1205 = vadd.f32 %v1008, %v1204
    %v1206 = vpop.f32.mrb[0].mxu0
    %v1207 = vadd.f32 %v1010, %v1206
    %1208 = vmatprep.mubr.f32.mxu0 %v274
    %1209 = vmatmul.mubr.f32.gmra.mrb[0].mxu0 %v273
    %v1210 = vpop.f32.mrb[0].mxu0
    %v1211 = vadd.f32 %v1014, %v1210
    %v1212 = vpop.f32.mrb[0].mxu0
    %v1213 = vadd.f32 %v1016, %v1212
    %1214 = vmatprep.mubr.f32.mxu0 %v283
    %1215 = vmatmul.mubr.f32.gmra.mrb[0].mxu0 %v282
    %v1216 = vpop.f32.mrb[0].mxu0
    %v1217 = vadd.f32 %v1020, %v1216
    %v1218 = vpop.f32.mrb[0].mxu0
    %v1219 = vadd.f32 %v1022, %v1218
    %1220 = vmatprep.mubr.f32.mxu0 %v292
    %1221 = vmatmul.mubr.f32.gmra.mrb[0].mxu0 %v291
    %v1222 = vpop.f32.mrb[0].mxu0
    %v1223 = vadd.f32 %v1026, %v1222
    %v1224 = vpop.f32.mrb[0].mxu0
    %v1225 = vadd.f32 %v1028, %v1224
    %1226 = vmatprep.mubr.f32.mxu0 %v301
    %1227 = vmatmul.mubr.f32.gmra.mrb[0].mxu0 %v300
    %v1228 = vpop.f32.mrb[0].mxu0
    %v1229 = vadd.f32 %v1032, %v1228
    %v1230 = vpop.f32.mrb[0].mxu0
    %v1231 = vadd.f32 %v1034, %v1230
    %1232 = vmatprep.mubr.f32.mxu0 %v310
    %1233 = vmatmul.mubr.f32.gmra.mrb[0].mxu0 %v309
    %v1234 = vpop.f32.mrb[0].mxu0
    %v1235 = vadd.f32 %v1038, %v1234
    %v1236 = vpop.f32.mrb[0].mxu0
    %v1237 = vadd.f32 %v1040, %v1236
    %1238 = vmatprep.mubr.f32.mxu0 %v319
    %1239 = vmatmul.mubr.f32.gmra.mrb[0].mxu0 %v318
    %v1240 = vpop.f32.mrb[0].mxu0
    %v1241 = vadd.f32 %v1044, %v1240
    %v1242 = vpop.f32.mrb[0].mxu0
    %v1243 = vadd.f32 %v1046, %v1242
    %1244 = vdwg.mxu0
    %1245 = vmatprep.subr.mxu0 %v516
    %1246 = vmatpush1.msra.mxu0 %v515
    %1247 = vmatprep.subr.mxu0 %v518
    %1248 = vmatpush1.msra.mxu0 %v517
    %1249 = vmatprep.subr.mxu0 %v520
    %1250 = vmatpush1.msra.mxu0 %v519
    %1251 = vmatprep.subr.mxu0 %v522
    %1252 = vmatpush1.msra.mxu0 %v521
    %1253 = vmatprep.subr.mxu0 %v524
    %1254 = vmatpush1.msra.mxu0 %v523
    %1255 = vmatprep.subr.mxu0 %v526
    %1256 = vmatpush1.msra.mxu0 %v525
    %1257 = vmatprep.subr.mxu0 %v528
    %1258 = vmatpush1.msra.mxu0 %v527
    %1259 = vmatprep.subr.mxu0 %v530
    %1260 = vmatpush1.msra.mxu0 %v529
    %1261 = vmatprep.subr.mxu0 %v532
    %1262 = vmatpush1.msra.mxu0 %v531
    %1263 = vmatprep.subr.mxu0 %v534
    %1264 = vmatpush1.msra.mxu0 %v533
    %1265 = vmatprep.subr.mxu0 %v536
    %1266 = vmatpush1.msra.mxu0 %v535
    %1267 = vmatprep.subr.mxu0 %v538
    %1268 = vmatpush1.msra.mxu0 %v537
    %1269 = vmatprep.subr.mxu0 %v540
    %1270 = vmatpush1.msra.mxu0 %v539
    %1271 = vmatprep.subr.mxu0 %v542
    %1272 = vmatpush1.msra.mxu0 %v541
    %1273 = vmatprep.subr.mxu0 %v544
    %1274 = vmatpush1.msra.mxu0 %v543
    %1275 = vmatprep.subr.mxu0 %v546
    %1276 = vmatpush1.msra.mxu0 %v545
    %1277 = vmatprep.subr.mxu0 %v548
    %1278 = vmatpush1.msra.mxu0 %v547
    %1279 = vmatprep.subr.mxu0 %v550
    %1280 = vmatpush1.msra.mxu0 %v549
    %1281 = vmatprep.subr.mxu0 %v552
    %1282 = vmatpush1.msra.mxu0 %v551
    %1283 = vmatprep.subr.mxu0 %v554
    %1284 = vmatpush1.msra.mxu0 %v553
    %1285 = vmatprep.subr.mxu0 %v556
    %1286 = vmatpush1.msra.mxu0 %v555
    %1287 = vmatprep.subr.mxu0 %v558
    %1288 = vmatpush1.msra.mxu0 %v557
    %1289 = vmatprep.subr.mxu0 %v560
    %1290 = vmatpush1.msra.mxu0 %v559
    %1291 = vmatprep.subr.mxu0 %v562
    %1292 = vmatpush1.msra.mxu0 %v561
    %1293 = vmatprep.subr.mxu0 %v564
    %1294 = vmatpush1.msra.mxu0 %v563
    %1295 = vmatprep.subr.mxu0 %v566
    %1296 = vmatpush1.msra.mxu0 %v565
    %1297 = vmatprep.subr.mxu0 %v568
    %1298 = vmatpush1.msra.mxu0 %v567
    %1299 = vmatprep.subr.mxu0 %v570
    %1300 = vmatpush1.msra.mxu0 %v569
    %1301 = vmatprep.subr.mxu0 %v572
    %1302 = vmatpush1.msra.mxu0 %v571
    %1303 = vmatprep.subr.mxu0 %v574
    %1304 = vmatpush1.msra.mxu0 %v573
    %1305 = vmatprep.subr.mxu0 %v576
    %1306 = vmatpush1.msra.mxu0 %v575
    %1307 = vmatprep.subr.mxu0 %v578
    %1308 = vmatpush1.msra.mxu0 %v577
    %1309 = vmatprep.mubr.f32.mxu0 %v132
    %1310 = vmatmul.mubr.f32.gmra.mrb[0].mxu0 %v131
    %v1311 = vpop.f32.mrb[0].mxu0
    %v1312 = vadd.f32 %v1115, %v1311
    %v1313 = vpop.f32.mrb[0].mxu0
    %v1314 = vadd.f32 %v1117, %v1313
    %1315 = vmatprep.mubr.f32.mxu0 %v141
    %1316 = vmatmul.mubr.f32.gmra.mrb[0].mxu0 %v140
    %v1317 = vpop.f32.mrb[0].mxu0
    %v1318 = vadd.f32 %v1121, %v1317
    %v1319 = vpop.f32.mrb[0].mxu0
    %v1320 = vadd.f32 %v1123, %v1319
    %1321 = vmatprep.mubr.f32.mxu0 %v150
    %1322 = vmatmul.mubr.f32.gmra.mrb[0].mxu0 %v149
    %v1323 = vpop.f32.mrb[0].mxu0
    %v1324 = vadd.f32 %v1127, %v1323
    %v1325 = vpop.f32.mrb[0].mxu0
    %v1326 = vadd.f32 %v1129, %v1325
    %1327 = vmatprep.mubr.f32.mxu0 %v159
    %1328 = vmatmul.mubr.f32.gmra.mrb[0].mxu0 %v158
    %v1329 = vpop.f32.mrb[0].mxu0
    %v1330 = vadd.f32 %v1133, %v1329
    %v1331 = vpop.f32.mrb[0].mxu0
    %v1332 = vadd.f32 %v1135, %v1331
    %1333 = vmatprep.mubr.f32.mxu0 %v168
    %1334 = vmatmul.mubr.f32.gmra.mrb[0].mxu0 %v167
    %v1335 = vpop.f32.mrb[0].mxu0
    %v1336 = vadd.f32 %v1139, %v1335
    %v1337 = vpop.f32.mrb[0].mxu0
    %v1338 = vadd.f32 %v1141, %v1337
    %1339 = vmatprep.mubr.f32.mxu0 %v177
    %1340 = vmatmul.mubr.f32.gmra.mrb[0].mxu0 %v176
    %v1341 = vpop.f32.mrb[0].mxu0
    %v1342 = vadd.f32 %v1145, %v1341
    %v1343 = vpop.f32.mrb[0].mxu0
    %v1344 = vadd.f32 %v1147, %v1343
    %1345 = vmatprep.mubr.f32.mxu0 %v186
    %1346 = vmatmul.mubr.f32.gmra.mrb[0].mxu0 %v185
    %v1347 = vpop.f32.mrb[0].mxu0
    %v1348 = vadd.f32 %v1151, %v1347
    %v1349 = vpop.f32.mrb[0].mxu0
    %v1350 = vadd.f32 %v1153, %v1349
    %1351 = vmatprep.mubr.f32.mxu0 %v195
    %1352 = vmatmul.mubr.f32.gmra.mrb[0].mxu0 %v194
    %v1353 = vpop.f32.mrb[0].mxu0
    %v1354 = vadd.f32 %v1157, %v1353
    %v1355 = vpop.f32.mrb[0].mxu0
    %v1356 = vadd.f32 %v1159, %v1355
    %1357 = vmatprep.mubr.f32.mxu0 %v204
    %1358 = vmatmul.mubr.f32.gmra.mrb[0].mxu0 %v203
    %v1359 = vpop.f32.mrb[0].mxu0
    %v1360 = vadd.f32 %v1163, %v1359
    %v1361 = vpop.f32.mrb[0].mxu0
    %v1362 = vadd.f32 %v1165, %v1361
    %1363 = vmatprep.mubr.f32.mxu0 %v213
    %1364 = vmatmul.mubr.f32.gmra.mrb[0].mxu0 %v212
    %v1365 = vpop.f32.mrb[0].mxu0
    %v1366 = vadd.f32 %v1169, %v1365
    %v1367 = vpop.f32.mrb[0].mxu0
    %v1368 = vadd.f32 %v1171, %v1367
    %1369 = vmatprep.mubr.f32.mxu0 %v222
    %1370 = vmatmul.mubr.f32.gmra.mrb[0].mxu0 %v221
    %v1371 = vpop.f32.mrb[0].mxu0
    %v1372 = vadd.f32 %v1175, %v1371
    %v1373 = vpop.f32.mrb[0].mxu0
    %v1374 = vadd.f32 %v1177, %v1373
    %1375 = vmatprep.mubr.f32.mxu0 %v231
    %1376 = vmatmul.mubr.f32.gmra.mrb[0].mxu0 %v230
    %v1377 = vpop.f32.mrb[0].mxu0
    %v1378 = vadd.f32 %v1181, %v1377
    %v1379 = vpop.f32.mrb[0].mxu0
    %v1380 = vadd.f32 %v1183, %v1379
    %1381 = vmatprep.mubr.f32.mxu0 %v240
    %1382 = vmatmul.mubr.f32.gmra.mrb[0].mxu0 %v239
    %v1383 = vpop.f32.mrb[0].mxu0
    %v1384 = vadd.f32 %v1187, %v1383
    %v1385 = vpop.f32.mrb[0].mxu0
    %v1386 = vadd.f32 %v1189, %v1385
    %1387 = vmatprep.mubr.f32.mxu0 %v249
    %1388 = vmatmul.mubr.f32.gmra.mrb[0].mxu0 %v248
    %v1389 = vpop.f32.mrb[0].mxu0
    %v1390 = vadd.f32 %v1193, %v1389
    %v1391 = vpop.f32.mrb[0].mxu0
    %v1392 = vadd.f32 %v1195, %v1391
    %1393 = vmatprep.mubr.f32.mxu0 %v258
    %1394 = vmatmul.mubr.f32.gmra.mrb[0].mxu0 %v257
    %v1395 = vpop.f32.mrb[0].mxu0
    %v1396 = vadd.f32 %v1199, %v1395
    %v1397 = vpop.f32.mrb[0].mxu0
    %v1398 = vadd.f32 %v1201, %v1397
    %1399 = vmatprep.mubr.f32.mxu0 %v267
    %1400 = vmatmul.mubr.f32.gmra.mrb[0].mxu0 %v266
    %v1401 = vpop.f32.mrb[0].mxu0
    %v1402 = vadd.f32 %v1205, %v1401
    %v1403 = vpop.f32.mrb[0].mxu0
    %v1404 = vadd.f32 %v1207, %v1403
    %1405 = vmatprep.mubr.f32.mxu0 %v276
    %1406 = vmatmul.mubr.f32.gmra.mrb[0].mxu0 %v275
    %v1407 = vpop.f32.mrb[0].mxu0
    %v1408 = vadd.f32 %v1211, %v1407
    %v1409 = vpop.f32.mrb[0].mxu0
    %v1410 = vadd.f32 %v1213, %v1409
    %1411 = vmatprep.mubr.f32.mxu0 %v285
    %1412 = vmatmul.mubr.f32.gmra.mrb[0].mxu0 %v284
    %v1413 = vpop.f32.mrb[0].mxu0
    %v1414 = vadd.f32 %v1217, %v1413
    %v1415 = vpop.f32.mrb[0].mxu0
    %v1416 = vadd.f32 %v1219, %v1415
    %1417 = vmatprep.mubr.f32.mxu0 %v294
    %1418 = vmatmul.mubr.f32.gmra.mrb[0].mxu0 %v293
    %v1419 = vpop.f32.mrb[0].mxu0
    %v1420 = vadd.f32 %v1223, %v1419
    %v1421 = vpop.f32.mrb[0].mxu0
    %v1422 = vadd.f32 %v1225, %v1421
    %1423 = vmatprep.mubr.f32.mxu0 %v303
    %1424 = vmatmul.mubr.f32.gmra.mrb[0].mxu0 %v302
    %v1425 = vpop.f32.mrb[0].mxu0
    %v1426 = vadd.f32 %v1229, %v1425
    %v1427 = vpop.f32.mrb[0].mxu0
    %v1428 = vadd.f32 %v1231, %v1427
    %1429 = vmatprep.mubr.f32.mxu0 %v312
    %1430 = vmatmul.mubr.f32.gmra.mrb[0].mxu0 %v311
    %v1431 = vpop.f32.mrb[0].mxu0
    %v1432 = vadd.f32 %v1235, %v1431
    %v1433 = vpop.f32.mrb[0].mxu0
    %v1434 = vadd.f32 %v1237, %v1433
    %1435 = vmatprep.mubr.f32.mxu0 %v321
    %1436 = vmatmul.mubr.f32.gmra.mrb[0].mxu0 %v320
    %v1437 = vpop.f32.mrb[0].mxu0
    %v1438 = vadd.f32 %v1241, %v1437
    %v1439 = vpop.f32.mrb[0].mxu0
    %v1440 = vadd.f32 %v1243, %v1439
    %1441 = vdwg.mxu0
    %1442 = vmatprep.subr.mxu0 %v580
    %1443 = vmatpush1.msra.mxu0 %v579
    %1444 = vmatprep.subr.mxu0 %v582
    %1445 = vmatpush1.msra.mxu0 %v581
    %1446 = vmatprep.subr.mxu0 %v584
    %1447 = vmatpush1.msra.mxu0 %v583
    %1448 = vmatprep.subr.mxu0 %v586
    %1449 = vmatpush1.msra.mxu0 %v585
    %1450 = vmatprep.subr.mxu0 0.0
    %1451 = vmatpush1.msra.mxu0 0.0
    %1452 = vmatprep.subr.mxu0 0.0
    %1453 = vmatpush1.msra.mxu0 0.0
    %1454 = vmatprep.subr.mxu0 0.0
    %1455 = vmatpush1.msra.mxu0 0.0
    %1456 = vmatprep.subr.mxu0 0.0
    %1457 = vmatpush1.msra.mxu0 0.0
    %1458 = vmatprep.subr.mxu0 0.0
    %1459 = vmatpush1.msra.mxu0 0.0
    %1460 = vmatprep.subr.mxu0 0.0
    %1461 = vmatpush1.msra.mxu0 0.0
    %1462 = vmatprep.subr.mxu0 0.0
    %1463 = vmatpush1.msra.mxu0 0.0
    %1464 = vmatprep.subr.mxu0 0.0
    %1465 = vmatpush1.msra.mxu0 0.0
    %1466 = vmatprep.subr.mxu0 0.0
    %1467 = vmatpush1.msra.mxu0 0.0
    %1468 = vmatprep.subr.mxu0 0.0
    %1469 = vmatpush1.msra.mxu0 0.0
    %1470 = vmatprep.subr.mxu0 0.0
    %1471 = vmatpush1.msra.mxu0 0.0
    %1472 = vmatprep.subr.mxu0 0.0
    %1473 = vmatpush1.msra.mxu0 0.0
    %1474 = vmatprep.subr.mxu0 0.0
    %1475 = vmatpush1.msra.mxu0 0.0
    %1476 = vmatprep.subr.mxu0 0.0
    %1477 = vmatpush1.msra.mxu0 0.0
    %1478 = vmatprep.subr.mxu0 0.0
    %1479 = vmatpush1.msra.mxu0 0.0
    %1480 = vmatprep.subr.mxu0 0.0
    %1481 = vmatpush1.msra.mxu0 0.0
    %1482 = vmatprep.subr.mxu0 0.0
    %1483 = vmatpush1.msra.mxu0 0.0
    %1484 = vmatprep.subr.mxu0 0.0
    %1485 = vmatpush1.msra.mxu0 0.0
    %1486 = vmatprep.subr.mxu0 0.0
    %1487 = vmatpush1.msra.mxu0 0.0
    %1488 = vmatprep.subr.mxu0 0.0
    %1489 = vmatpush1.msra.mxu0 0.0
    %1490 = vmatprep.subr.mxu0 0.0
    %1491 = vmatpush1.msra.mxu0 0.0
    %1492 = vmatprep.subr.mxu0 0.0
    %1493 = vmatpush1.msra.mxu0 0.0
    %1494 = vmatprep.subr.mxu0 0.0
    %1495 = vmatpush1.msra.mxu0 0.0
    %1496 = vmatprep.subr.mxu0 0.0
    %1497 = vmatpush1.msra.mxu0 0.0
    %1498 = vmatprep.subr.mxu0 0.0
    %1499 = vmatpush1.msra.mxu0 0.0
    %1500 = vmatprep.subr.mxu0 0.0
    %1501 = vmatpush1.msra.mxu0 0.0
    %1502 = vmatprep.subr.mxu0 0.0
    %1503 = vmatpush1.msra.mxu0 0.0
    %1504 = vmatprep.subr.mxu0 0.0
    %1505 = vmatpush1.msra.mxu0 0.0
    %1506 = vmatprep.mubr.f32.mxu0 0.0
    %1507 = vmatmul.mubr.f32.gmra.mrb[0].mxu0 %v589
    %v1508 = vpop.f32.mrb[0].mxu0
    %v1509 = vadd.f32 %v1312, %v1508
    %v1510 = vpop.f32.mrb[0].mxu0
    %v1511 = vadd.f32 %v1314, %v1510
    %1512 = vmatprep.mubr.f32.mxu0 0.0
    %1513 = vmatmul.mubr.f32.gmra.mrb[0].mxu0 %v592
    %v1514 = vpop.f32.mrb[0].mxu0
    %v1515 = vadd.f32 %v1318, %v1514
    %v1516 = vpop.f32.mrb[0].mxu0
    %v1517 = vadd.f32 %v1320, %v1516
    %1518 = vmatprep.mubr.f32.mxu0 0.0
    %1519 = vmatmul.mubr.f32.gmra.mrb[0].mxu0 %v595
    %v1520 = vpop.f32.mrb[0].mxu0
    %v1521 = vadd.f32 %v1324, %v1520
    %v1522 = vpop.f32.mrb[0].mxu0
    %v1523 = vadd.f32 %v1326, %v1522
    %1524 = vmatprep.mubr.f32.mxu0 0.0
    %1525 = vmatmul.mubr.f32.gmra.mrb[0].mxu0 %v598
    %v1526 = vpop.f32.mrb[0].mxu0
    %v1527 = vadd.f32 %v1330, %v1526
    %v1528 = vpop.f32.mrb[0].mxu0
    %v1529 = vadd.f32 %v1332, %v1528
    %1530 = vmatprep.mubr.f32.mxu0 0.0
    %1531 = vmatmul.mubr.f32.gmra.mrb[0].mxu0 %v601
    %v1532 = vpop.f32.mrb[0].mxu0
    %v1533 = vadd.f32 %v1336, %v1532
    %v1534 = vpop.f32.mrb[0].mxu0
    %v1535 = vadd.f32 %v1338, %v1534
    %1536 = vmatprep.mubr.f32.mxu0 0.0
    %1537 = vmatmul.mubr.f32.gmra.mrb[0].mxu0 %v604
    %v1538 = vpop.f32.mrb[0].mxu0
    %v1539 = vadd.f32 %v1342, %v1538
    %v1540 = vpop.f32.mrb[0].mxu0
    %v1541 = vadd.f32 %v1344, %v1540
    %1542 = vmatprep.mubr.f32.mxu0 0.0
    %1543 = vmatmul.mubr.f32.gmra.mrb[0].mxu0 %v607
    %v1544 = vpop.f32.mrb[0].mxu0
    %v1545 = vadd.f32 %v1348, %v1544
    %v1546 = vpop.f32.mrb[0].mxu0
    %v1547 = vadd.f32 %v1350, %v1546
    %1548 = vmatprep.mubr.f32.mxu0 0.0
    %1549 = vmatmul.mubr.f32.gmra.mrb[0].mxu0 %v610
    %v1550 = vpop.f32.mrb[0].mxu0
    %v1551 = vadd.f32 %v1354, %v1550
    %v1552 = vpop.f32.mrb[0].mxu0
    %v1553 = vadd.f32 %v1356, %v1552
    %1554 = vmatprep.mubr.f32.mxu0 0.0
    %1555 = vmatmul.mubr.f32.gmra.mrb[0].mxu0 %v613
    %v1556 = vpop.f32.mrb[0].mxu0
    %v1557 = vadd.f32 %v1360, %v1556
    %v1558 = vpop.f32.mrb[0].mxu0
    %v1559 = vadd.f32 %v1362, %v1558
    %1560 = vmatprep.mubr.f32.mxu0 0.0
    %1561 = vmatmul.mubr.f32.gmra.mrb[0].mxu0 %v616
    %v1562 = vpop.f32.mrb[0].mxu0
    %v1563 = vadd.f32 %v1366, %v1562
    %v1564 = vpop.f32.mrb[0].mxu0
    %v1565 = vadd.f32 %v1368, %v1564
    %1566 = vmatprep.mubr.f32.mxu0 0.0
    %1567 = vmatmul.mubr.f32.gmra.mrb[0].mxu0 %v619
    %v1568 = vpop.f32.mrb[0].mxu0
    %v1569 = vadd.f32 %v1372, %v1568
    %v1570 = vpop.f32.mrb[0].mxu0
    %v1571 = vadd.f32 %v1374, %v1570
    %1572 = vmatprep.mubr.f32.mxu0 0.0
    %1573 = vmatmul.mubr.f32.gmra.mrb[0].mxu0 %v622
    %v1574 = vpop.f32.mrb[0].mxu0
    %v1575 = vadd.f32 %v1378, %v1574
    %v1576 = vpop.f32.mrb[0].mxu0
    %v1577 = vadd.f32 %v1380, %v1576
    %1578 = vmatprep.mubr.f32.mxu0 0.0
    %1579 = vmatmul.mubr.f32.gmra.mrb[0].mxu0 %v625
    %v1580 = vpop.f32.mrb[0].mxu0
    %v1581 = vadd.f32 %v1384, %v1580
    %v1582 = vpop.f32.mrb[0].mxu0
    %v1583 = vadd.f32 %v1386, %v1582
    %1584 = vmatprep.mubr.f32.mxu0 0.0
    %1585 = vmatmul.mubr.f32.gmra.mrb[0].mxu0 %v628
    %v1586 = vpop.f32.mrb[0].mxu0
    %v1587 = vadd.f32 %v1390, %v1586
    %v1588 = vpop.f32.mrb[0].mxu0
    %v1589 = vadd.f32 %v1392, %v1588
    %1590 = vmatprep.mubr.f32.mxu0 0.0
    %1591 = vmatmul.mubr.f32.gmra.mrb[0].mxu0 %v631
    %v1592 = vpop.f32.mrb[0].mxu0
    %v1593 = vadd.f32 %v1396, %v1592
    %v1594 = vpop.f32.mrb[0].mxu0
    %v1595 = vadd.f32 %v1398, %v1594
    %1596 = vmatprep.mubr.f32.mxu0 0.0
    %1597 = vmatmul.mubr.f32.gmra.mrb[0].mxu0 %v634
    %v1598 = vpop.f32.mrb[0].mxu0
    %v1599 = vadd.f32 %v1402, %v1598
    %v1600 = vpop.f32.mrb[0].mxu0
    %v1601 = vadd.f32 %v1404, %v1600
    %1602 = vmatprep.mubr.f32.mxu0 0.0
    %1603 = vmatmul.mubr.f32.gmra.mrb[0].mxu0 %v637
    %v1604 = vpop.f32.mrb[0].mxu0
    %v1605 = vadd.f32 %v1408, %v1604
    %v1606 = vpop.f32.mrb[0].mxu0
    %v1607 = vadd.f32 %v1410, %v1606
    %1608 = vmatprep.mubr.f32.mxu0 0.0
    %1609 = vmatmul.mubr.f32.gmra.mrb[0].mxu0 %v640
    %v1610 = vpop.f32.mrb[0].mxu0
    %v1611 = vadd.f32 %v1414, %v1610
    %v1612 = vpop.f32.mrb[0].mxu0
    %v1613 = vadd.f32 %v1416, %v1612
    %1614 = vmatprep.mubr.f32.mxu0 0.0
    %1615 = vmatmul.mubr.f32.gmra.mrb[0].mxu0 %v643
    %v1616 = vpop.f32.mrb[0].mxu0
    %v1617 = vadd.f32 %v1420, %v1616
    %v1618 = vpop.f32.mrb[0].mxu0
    %v1619 = vadd.f32 %v1422, %v1618
    %1620 = vmatprep.mubr.f32.mxu0 0.0
    %1621 = vmatmul.mubr.f32.gmra.mrb[0].mxu0 %v646
    %v1622 = vpop.f32.mrb[0].mxu0
    %v1623 = vadd.f32 %v1426, %v1622
    %v1624 = vpop.f32.mrb[0].mxu0
    %v1625 = vadd.f32 %v1428, %v1624
    %1626 = vmatprep.mubr.f32.mxu0 0.0
    %1627 = vmatmul.mubr.f32.gmra.mrb[0].mxu0 %v649
    %v1628 = vpop.f32.mrb[0].mxu0
    %v1629 = vadd.f32 %v1432, %v1628
    %v1630 = vpop.f32.mrb[0].mxu0
    %v1631 = vadd.f32 %v1434, %v1630
    %1632 = vmatprep.mubr.f32.mxu0 0.0
    %1633 = vmatmul.mubr.f32.gmra.mrb[0].mxu0 %v652
    %v1634 = vpop.f32.mrb[0].mxu0
    %v1635 = vadd.f32 %v1438, %v1634
    %v1636 = vpop.f32.mrb[0].mxu0
    %v1637 = vadd.f32 %v1440, %v1636
    %1638 = vdwg.mxu0
    %vm1639 = vcmask 556032
    %v1640 = vsel %vm1639, %v1511, 0.0
    %v1641 = vadd.f32 %v1509, %v1640
    %1642 = vadd.xlane.f32.xlu0 %v1641
    %v1643 = vpop.xlane.xlu0 %1642
    %v1644 = vsel %vm1639, %v1517, 0.0
    %v1645 = vadd.f32 %v1515, %v1644
    %1646 = vadd.xlane.f32.xlu0 %v1645
    %v1647 = vpop.xlane.xlu0 %1646
    %v1648 = vsel %vm1639, %v1523, 0.0
    %v1649 = vadd.f32 %v1521, %v1648
    %1650 = vadd.xlane.f32.xlu0 %v1649
    %v1651 = vpop.xlane.xlu0 %1650
    %v1652 = vsel %vm1639, %v1529, 0.0
    %v1653 = vadd.f32 %v1527, %v1652
    %1654 = vadd.xlane.f32.xlu0 %v1653
    %v1655 = vpop.xlane.xlu0 %1654
    %v1656 = vsel %vm1639, %v1535, 0.0
    %v1657 = vadd.f32 %v1533, %v1656
    %1658 = vadd.xlane.f32.xlu0 %v1657
    %v1659 = vpop.xlane.xlu0 %1658
    %v1660 = vsel %vm1639, %v1541, 0.0
    %v1661 = vadd.f32 %v1539, %v1660
    %1662 = vadd.xlane.f32.xlu0 %v1661
    %v1663 = vpop.xlane.xlu0 %1662
    %v1664 = vsel %vm1639, %v1547, 0.0
    %v1665 = vadd.f32 %v1545, %v1664
    %1666 = vadd.xlane.f32.xlu0 %v1665
    %v1667 = vpop.xlane.xlu0 %1666
    %v1668 = vsel %vm1639, %v1553, 0.0
    %v1669 = vadd.f32 %v1551, %v1668
    %1670 = vadd.xlane.f32.xlu0 %v1669
    %v1671 = vpop.xlane.xlu0 %1670
    %v1672 = vsel %vm1639, %v1559, 0.0
    %v1673 = vadd.f32 %v1557, %v1672
    %1674 = vadd.xlane.f32.xlu0 %v1673
    %v1675 = vpop.xlane.xlu0 %1674
    %v1676 = vsel %vm1639, %v1565, 0.0
    %v1677 = vadd.f32 %v1563, %v1676
    %1678 = vadd.xlane.f32.xlu0 %v1677
    %v1679 = vpop.xlane.xlu0 %1678
    %v1680 = vsel %vm1639, %v1571, 0.0
    %v1681 = vadd.f32 %v1569, %v1680
    %1682 = vadd.xlane.f32.xlu0 %v1681
    %v1683 = vpop.xlane.xlu0 %1682
    %v1684 = vsel %vm1639, %v1577, 0.0
    %v1685 = vadd.f32 %v1575, %v1684
    %1686 = vadd.xlane.f32.xlu0 %v1685
    %v1687 = vpop.xlane.xlu0 %1686
    %v1688 = vsel %vm1639, %v1583, 0.0
    %v1689 = vadd.f32 %v1581, %v1688
    %1690 = vadd.xlane.f32.xlu0 %v1689
    %v1691 = vpop.xlane.xlu0 %1690
    %v1692 = vsel %vm1639, %v1589, 0.0
    %v1693 = vadd.f32 %v1587, %v1692
    %1694 = vadd.xlane.f32.xlu0 %v1693
    %v1695 = vpop.xlane.xlu0 %1694
    %v1696 = vsel %vm1639, %v1595, 0.0
    %v1697 = vadd.f32 %v1593, %v1696
    %1698 = vadd.xlane.f32.xlu0 %v1697
    %v1699 = vpop.xlane.xlu0 %1698
    %v1700 = vsel %vm1639, %v1601, 0.0
    %v1701 = vadd.f32 %v1599, %v1700
    %1702 = vadd.xlane.f32.xlu0 %v1701
    %v1703 = vpop.xlane.xlu0 %1702
    %v1704 = vsel %vm1639, %v1607, 0.0
    %v1705 = vadd.f32 %v1605, %v1704
    %1706 = vadd.xlane.f32.xlu0 %v1705
    %v1707 = vpop.xlane.xlu0 %1706
    %v1708 = vsel %vm1639, %v1613, 0.0
    %v1709 = vadd.f32 %v1611, %v1708
    %1710 = vadd.xlane.f32.xlu0 %v1709
    %v1711 = vpop.xlane.xlu0 %1710
    %v1712 = vsel %vm1639, %v1619, 0.0
    %v1713 = vadd.f32 %v1617, %v1712
    %1714 = vadd.xlane.f32.xlu0 %v1713
    %v1715 = vpop.xlane.xlu0 %1714
    %v1716 = vsel %vm1639, %v1625, 0.0
    %v1717 = vadd.f32 %v1623, %v1716
    %1718 = vadd.xlane.f32.xlu0 %v1717
    %v1719 = vpop.xlane.xlu0 %1718
    %v1720 = vsel %vm1639, %v1631, 0.0
    %v1721 = vadd.f32 %v1629, %v1720
    %1722 = vadd.xlane.f32.xlu0 %v1721
    %v1723 = vpop.xlane.xlu0 %1722
    %v1724 = vsel %vm1639, %v1637, 0.0
    %v1725 = vadd.f32 %v1635, %v1724
    %1726 = vadd.xlane.f32.xlu0 %v1725
    %v1727 = vpop.xlane.xlu0 %1726
    %v1728 = vmul.f32 %v1509, %v1509
    %v1729 = vmul.f32 %v1511, %v1511
    %v1730 = vmul.f32 %v1515, %v1515
    %v1731 = vmul.f32 %v1517, %v1517
    %v1732 = vmul.f32 %v1521, %v1521
    %v1733 = vmul.f32 %v1523, %v1523
    %v1734 = vmul.f32 %v1527, %v1527
    %v1735 = vmul.f32 %v1529, %v1529
    %v1736 = vmul.f32 %v1533, %v1533
    %v1737 = vmul.f32 %v1535, %v1535
    %v1738 = vmul.f32 %v1539, %v1539
    %v1739 = vmul.f32 %v1541, %v1541
    %v1740 = vmul.f32 %v1545, %v1545
    %v1741 = vmul.f32 %v1547, %v1547
    %v1742 = vmul.f32 %v1551, %v1551
    %v1743 = vmul.f32 %v1553, %v1553
    %v1744 = vmul.f32 %v1557, %v1557
    %v1745 = vmul.f32 %v1559, %v1559
    %v1746 = vmul.f32 %v1563, %v1563
    %v1747 = vmul.f32 %v1565, %v1565
    %v1748 = vmul.f32 %v1569, %v1569
    %v1749 = vmul.f32 %v1571, %v1571
    %v1750 = vmul.f32 %v1575, %v1575
    %v1751 = vmul.f32 %v1577, %v1577
    %v1752 = vmul.f32 %v1581, %v1581
    %v1753 = vmul.f32 %v1583, %v1583
    %v1754 = vmul.f32 %v1587, %v1587
    %v1755 = vmul.f32 %v1589, %v1589
    %v1756 = vmul.f32 %v1593, %v1593
    %v1757 = vmul.f32 %v1595, %v1595
    %v1758 = vmul.f32 %v1599, %v1599
    %v1759 = vmul.f32 %v1601, %v1601
    %v1760 = vmul.f32 %v1605, %v1605
    %v1761 = vmul.f32 %v1607, %v1607
    %v1762 = vmul.f32 %v1611, %v1611
    %v1763 = vmul.f32 %v1613, %v1613
    %v1764 = vmul.f32 %v1617, %v1617
    %v1765 = vmul.f32 %v1619, %v1619
    %v1766 = vmul.f32 %v1623, %v1623
    %v1767 = vmul.f32 %v1625, %v1625
    %v1768 = vmul.f32 %v1629, %v1629
    %v1769 = vmul.f32 %v1631, %v1631
    %v1770 = vmul.f32 %v1635, %v1635
    %v1771 = vmul.f32 %v1637, %v1637
    %v1772 = vsel %vm1639, %v1729, 0.0
    %v1773 = vadd.f32 %v1728, %v1772
    %1774 = vadd.xlane.f32.xlu0 %v1773
    %v1775 = vpop.xlane.xlu0 %1774
    %v1776 = vsel %vm1639, %v1731, 0.0
    %v1777 = vadd.f32 %v1730, %v1776
    %1778 = vadd.xlane.f32.xlu0 %v1777
    %v1779 = vpop.xlane.xlu0 %1778
    %v1780 = vsel %vm1639, %v1733, 0.0
    %v1781 = vadd.f32 %v1732, %v1780
    %1782 = vadd.xlane.f32.xlu0 %v1781
    %v1783 = vpop.xlane.xlu0 %1782
    %v1784 = vsel %vm1639, %v1735, 0.0
    %v1785 = vadd.f32 %v1734, %v1784
    %1786 = vadd.xlane.f32.xlu0 %v1785
    %v1787 = vpop.xlane.xlu0 %1786
    %v1788 = vsel %vm1639, %v1737, 0.0
    %v1789 = vadd.f32 %v1736, %v1788
    %1790 = vadd.xlane.f32.xlu0 %v1789
    %v1791 = vpop.xlane.xlu0 %1790
    %v1792 = vsel %vm1639, %v1739, 0.0
    %v1793 = vadd.f32 %v1738, %v1792
    %1794 = vadd.xlane.f32.xlu0 %v1793
    %v1795 = vpop.xlane.xlu0 %1794
    %v1796 = vsel %vm1639, %v1741, 0.0
    %v1797 = vadd.f32 %v1740, %v1796
    %1798 = vadd.xlane.f32.xlu0 %v1797
    %v1799 = vpop.xlane.xlu0 %1798
    %v1800 = vsel %vm1639, %v1743, 0.0
    %v1801 = vadd.f32 %v1742, %v1800
    %1802 = vadd.xlane.f32.xlu0 %v1801
    %v1803 = vpop.xlane.xlu0 %1802
    %v1804 = vsel %vm1639, %v1745, 0.0
    %v1805 = vadd.f32 %v1744, %v1804
    %1806 = vadd.xlane.f32.xlu0 %v1805
    %v1807 = vpop.xlane.xlu0 %1806
    %v1808 = vsel %vm1639, %v1747, 0.0
    %v1809 = vadd.f32 %v1746, %v1808
    %1810 = vadd.xlane.f32.xlu0 %v1809
    %v1811 = vpop.xlane.xlu0 %1810
    %v1812 = vsel %vm1639, %v1749, 0.0
    %v1813 = vadd.f32 %v1748, %v1812
    %1814 = vadd.xlane.f32.xlu0 %v1813
    %v1815 = vpop.xlane.xlu0 %1814
    %v1816 = vsel %vm1639, %v1751, 0.0
    %v1817 = vadd.f32 %v1750, %v1816
    %1818 = vadd.xlane.f32.xlu0 %v1817
    %v1819 = vpop.xlane.xlu0 %1818
    %v1820 = vsel %vm1639, %v1753, 0.0
    %v1821 = vadd.f32 %v1752, %v1820
    %1822 = vadd.xlane.f32.xlu0 %v1821
    %v1823 = vpop.xlane.xlu0 %1822
    %v1824 = vsel %vm1639, %v1755, 0.0
    %v1825 = vadd.f32 %v1754, %v1824
    %1826 = vadd.xlane.f32.xlu0 %v1825
    %v1827 = vpop.xlane.xlu0 %1826
    %v1828 = vsel %vm1639, %v1757, 0.0
    %v1829 = vadd.f32 %v1756, %v1828
    %1830 = vadd.xlane.f32.xlu0 %v1829
    %v1831 = vpop.xlane.xlu0 %1830
    %v1832 = vsel %vm1639, %v1759, 0.0
    %v1833 = vadd.f32 %v1758, %v1832
    %1834 = vadd.xlane.f32.xlu0 %v1833
    %v1835 = vpop.xlane.xlu0 %1834
    %v1836 = vsel %vm1639, %v1761, 0.0
    %v1837 = vadd.f32 %v1760, %v1836
    %1838 = vadd.xlane.f32.xlu0 %v1837
    %v1839 = vpop.xlane.xlu0 %1838
    %v1840 = vsel %vm1639, %v1763, 0.0
    %v1841 = vadd.f32 %v1762, %v1840
    %1842 = vadd.xlane.f32.xlu0 %v1841
    %v1843 = vpop.xlane.xlu0 %1842
    %v1844 = vsel %vm1639, %v1765, 0.0
    %v1845 = vadd.f32 %v1764, %v1844
    %1846 = vadd.xlane.f32.xlu0 %v1845
    %v1847 = vpop.xlane.xlu0 %1846
    %v1848 = vsel %vm1639, %v1767, 0.0
    %v1849 = vadd.f32 %v1766, %v1848
    %1850 = vadd.xlane.f32.xlu0 %v1849
    %v1851 = vpop.xlane.xlu0 %1850
    %v1852 = vsel %vm1639, %v1769, 0.0
    %v1853 = vadd.f32 %v1768, %v1852
    %1854 = vadd.xlane.f32.xlu0 %v1853
    %v1855 = vpop.xlane.xlu0 %1854
    %v1856 = vsel %vm1639, %v1771, 0.0
    %v1857 = vadd.f32 %v1770, %v1856
    %1858 = vadd.xlane.f32.xlu0 %v1857
    %v1859 = vpop.xlane.xlu0 %1858
    %v1860 = vmul.f32 %v1643, 0.0051020407
    %v1861 = vmul.f32 %v1647, 0.0051020407
    %v1862 = vmul.f32 %v1651, 0.0051020407
    %v1863 = vmul.f32 %v1655, 0.0051020407
    %v1864 = vmul.f32 %v1659, 0.0051020407
    %v1865 = vmul.f32 %v1663, 0.0051020407
    %v1866 = vmul.f32 %v1667, 0.0051020407
    %v1867 = vmul.f32 %v1671, 0.0051020407
    %v1868 = vmul.f32 %v1675, 0.0051020407
    %v1869 = vmul.f32 %v1679, 0.0051020407
    %v1870 = vmul.f32 %v1683, 0.0051020407
    %v1871 = vmul.f32 %v1687, 0.0051020407
    %v1872 = vmul.f32 %v1691, 0.0051020407
    %v1873 = vmul.f32 %v1695, 0.0051020407
    %v1874 = vmul.f32 %v1699, 0.0051020407
    %v1875 = vmul.f32 %v1703, 0.0051020407
    %v1876 = vmul.f32 %v1707, 0.0051020407
    %v1877 = vmul.f32 %v1711, 0.0051020407
    %v1878 = vmul.f32 %v1715, 0.0051020407
    %v1879 = vmul.f32 %v1719, 0.0051020407
    %v1880 = vmul.f32 %v1723, 0.0051020407
    %v1881 = vmul.f32 %v1727, 0.0051020407
    %v1882 = vmul.f32 %v1775, 0.0051020407
    %v1883 = vmul.f32 %v1779, 0.0051020407
    %v1884 = vmul.f32 %v1783, 0.0051020407
    %v1885 = vmul.f32 %v1787, 0.0051020407
    %v1886 = vmul.f32 %v1791, 0.0051020407
    %v1887 = vmul.f32 %v1795, 0.0051020407
    %v1888 = vmul.f32 %v1799, 0.0051020407
    %v1889 = vmul.f32 %v1803, 0.0051020407
    %v1890 = vmul.f32 %v1807, 0.0051020407
    %v1891 = vmul.f32 %v1811, 0.0051020407
    %v1892 = vmul.f32 %v1815, 0.0051020407
    %v1893 = vmul.f32 %v1819, 0.0051020407
    %v1894 = vmul.f32 %v1823, 0.0051020407
    %v1895 = vmul.f32 %v1827, 0.0051020407
    %v1896 = vmul.f32 %v1831, 0.0051020407
    %v1897 = vmul.f32 %v1835, 0.0051020407
    %v1898 = vmul.f32 %v1839, 0.0051020407
    %v1899 = vmul.f32 %v1843, 0.0051020407
    %v1900 = vmul.f32 %v1847, 0.0051020407
    %v1901 = vmul.f32 %v1851, 0.0051020407
    %v1902 = vmul.f32 %v1855, 0.0051020407
    %v1903 = vmul.f32 %v1859, 0.0051020407
    %v1904 = vmul.f32 %v1860, %v1860
    %v1905 = vmul.f32 %v1861, %v1861
    %v1906 = vmul.f32 %v1862, %v1862
    %v1907 = vmul.f32 %v1863, %v1863
    %v1908 = vmul.f32 %v1864, %v1864
    %v1909 = vmul.f32 %v1865, %v1865
    %v1910 = vmul.f32 %v1866, %v1866
    %v1911 = vmul.f32 %v1867, %v1867
    %v1912 = vmul.f32 %v1868, %v1868
    %v1913 = vmul.f32 %v1869, %v1869
    %v1914 = vmul.f32 %v1870, %v1870
    %v1915 = vmul.f32 %v1871, %v1871
    %v1916 = vmul.f32 %v1872, %v1872
    %v1917 = vmul.f32 %v1873, %v1873
    %v1918 = vmul.f32 %v1874, %v1874
    %v1919 = vmul.f32 %v1875, %v1875
    %v1920 = vmul.f32 %v1876, %v1876
    %v1921 = vmul.f32 %v1877, %v1877
    %v1922 = vmul.f32 %v1878, %v1878
    %v1923 = vmul.f32 %v1879, %v1879
    %v1924 = vmul.f32 %v1880, %v1880
    %v1925 = vmul.f32 %v1881, %v1881
    %v1926 = vsub.f32 %v1882, %v1904
    %v1927 = vsub.f32 %v1883, %v1905
    %v1928 = vsub.f32 %v1884, %v1906
    %v1929 = vsub.f32 %v1885, %v1907
    %v1930 = vsub.f32 %v1886, %v1908
    %v1931 = vsub.f32 %v1887, %v1909
    %v1932 = vsub.f32 %v1888, %v1910
    %v1933 = vsub.f32 %v1889, %v1911
    %v1934 = vsub.f32 %v1890, %v1912
    %v1935 = vsub.f32 %v1891, %v1913
    %v1936 = vsub.f32 %v1892, %v1914
    %v1937 = vsub.f32 %v1893, %v1915
    %v1938 = vsub.f32 %v1894, %v1916
    %v1939 = vsub.f32 %v1895, %v1917
    %v1940 = vsub.f32 %v1896, %v1918
    %v1941 = vsub.f32 %v1897, %v1919
    %v1942 = vsub.f32 %v1898, %v1920
    %v1943 = vsub.f32 %v1899, %v1921
    %v1944 = vsub.f32 %v1900, %v1922
    %v1945 = vsub.f32 %v1901, %v1923
    %v1946 = vsub.f32 %v1902, %v1924
    %v1947 = vsub.f32 %v1903, %v1925
    %v1948 = vadd.f32 %v1926, 0.001
    %v1949 = vadd.f32 %v1927, 0.001
    %v1950 = vadd.f32 %v1928, 0.001
    %v1951 = vadd.f32 %v1929, 0.001
    %v1952 = vadd.f32 %v1930, 0.001
    %v1953 = vadd.f32 %v1931, 0.001
    %v1954 = vadd.f32 %v1932, 0.001
    %v1955 = vadd.f32 %v1933, 0.001
    %v1956 = vadd.f32 %v1934, 0.001
    %v1957 = vadd.f32 %v1935, 0.001
    %v1958 = vadd.f32 %v1936, 0.001
    %v1959 = vadd.f32 %v1937, 0.001
    %v1960 = vadd.f32 %v1938, 0.001
    %v1961 = vadd.f32 %v1939, 0.001
    %v1962 = vadd.f32 %v1940, 0.001
    %v1963 = vadd.f32 %v1941, 0.001
    %v1964 = vadd.f32 %v1942, 0.001
    %v1965 = vadd.f32 %v1943, 0.001
    %v1966 = vadd.f32 %v1944, 0.001
    %v1967 = vadd.f32 %v1945, 0.001
    %v1968 = vadd.f32 %v1946, 0.001
    %v1969 = vadd.f32 %v1947, 0.001
    %v1970 = vrsqrt.pop %v1948
    %v1971 = vrsqrt.pop %v1949
    %v1972 = vrsqrt.pop %v1950
    %v1973 = vrsqrt.pop %v1951
    %v1974 = vrsqrt.pop %v1952
    %v1975 = vrsqrt.pop %v1953
    %v1976 = vrsqrt.pop %v1954
    %v1977 = vrsqrt.pop %v1955
    %v1978 = vrsqrt.pop %v1956
    %v1979 = vrsqrt.pop %v1957
    %v1980 = vrsqrt.pop %v1958
    %v1981 = vrsqrt.pop %v1959
    %v1982 = vrsqrt.pop %v1960
    %v1983 = vrsqrt.pop %v1961
    %v1984 = vrsqrt.pop %v1962
    %v1985 = vrsqrt.pop %v1963
    %v1986 = vrsqrt.pop %v1964
    %v1987 = vrsqrt.pop %v1965
    %v1988 = vrsqrt.pop %v1966
    %v1989 = vrsqrt.pop %v1967
    %v1990 = vrsqrt.pop %v1968
    %v1991 = vrsqrt.pop %v1969
    %v1992 = vld [vmem:[%s2] sm:$0xff]
    %v1993 = vld [vmem:[%s2 + $0x8] sm:$0xff]
    %v1994 = vld [vmem:[%s2 + $0x10] sm:$0xff]
    %v1995 = vld [vmem:[%s2 + $0x18] sm:$0xff]
    %v1996 = vld [vmem:[%s2 + $0x20] sm:$0xff]
    %v1997 = vld [vmem:[%s2 + $0x28] sm:$0xff]
    %v1998 = vld [vmem:[%s2 + $0x30] sm:$0xff]
    %v1999 = vld [vmem:[%s2 + $0x38] sm:$0xff]
    %v2000 = vld [vmem:[%s2 + $0x40] sm:$0xff]
    %v2001 = vld [vmem:[%s2 + $0x48] sm:$0xff]
    %v2002 = vld [vmem:[%s2 + $0x50] sm:$0xff]
    %v2003 = vld [vmem:[%s2 + $0x58] sm:$0xff]
    %v2004 = vld [vmem:[%s2 + $0x60] sm:$0xff]
    %v2005 = vld [vmem:[%s2 + $0x68] sm:$0xff]
    %v2006 = vld [vmem:[%s2 + $0x70] sm:$0xff]
    %v2007 = vld [vmem:[%s2 + $0x78] sm:$0xff]
    %v2008 = vld [vmem:[%s2 + $0x80] sm:$0xff]
    %v2009 = vld [vmem:[%s2 + $0x88] sm:$0xff]
    %v2010 = vld [vmem:[%s2 + $0x90] sm:$0xff]
    %v2011 = vld [vmem:[%s2 + $0x98] sm:$0xff]
    %v2012 = vld [vmem:[%s2 + $0xa0] sm:$0xff]
    %v2013 = vld [vmem:[%s2 + $0xa8] sm:$0xff]
    %v2014 = vmul.f32 %v1992, %v1970
    %v2015 = vmul.f32 %v1993, %v1971
    %v2016 = vmul.f32 %v1994, %v1972
    %v2017 = vmul.f32 %v1995, %v1973
    %v2018 = vmul.f32 %v1996, %v1974
    %v2019 = vmul.f32 %v1997, %v1975
    %v2020 = vmul.f32 %v1998, %v1976
    %v2021 = vmul.f32 %v1999, %v1977
    %v2022 = vmul.f32 %v2000, %v1978
    %v2023 = vmul.f32 %v2001, %v1979
    %v2024 = vmul.f32 %v2002, %v1980
    %v2025 = vmul.f32 %v2003, %v1981
    %v2026 = vmul.f32 %v2004, %v1982
    %v2027 = vmul.f32 %v2005, %v1983
    %v2028 = vmul.f32 %v2006, %v1984
    %v2029 = vmul.f32 %v2007, %v1985
    %v2030 = vmul.f32 %v2008, %v1986
    %v2031 = vmul.f32 %v2009, %v1987
    %v2032 = vmul.f32 %v2010, %v1988
    %v2033 = vmul.f32 %v2011, %v1989
    %v2034 = vmul.f32 %v2012, %v1990
    %v2035 = vmul.f32 %v2013, %v1991
    %v2036 = vmul.f32 %v1860, %v2014
    %v2037 = vmul.f32 %v1861, %v2015
    %v2038 = vmul.f32 %v1862, %v2016
    %v2039 = vmul.f32 %v1863, %v2017
    %v2040 = vmul.f32 %v1864, %v2018
    %v2041 = vmul.f32 %v1865, %v2019
    %v2042 = vmul.f32 %v1866, %v2020
    %v2043 = vmul.f32 %v1867, %v2021
    %v2044 = vmul.f32 %v1868, %v2022
    %v2045 = vmul.f32 %v1869, %v2023
    %v2046 = vmul.f32 %v1870, %v2024
    %v2047 = vmul.f32 %v1871, %v2025
    %v2048 = vmul.f32 %v1872, %v2026
    %v2049 = vmul.f32 %v1873, %v2027
    %v2050 = vmul.f32 %v1874, %v2028
    %v2051 = vmul.f32 %v1875, %v2029
    %v2052 = vmul.f32 %v1876, %v2030
    %v2053 = vmul.f32 %v1877, %v2031
    %v2054 = vmul.f32 %v1878, %v2032
    %v2055 = vmul.f32 %v1879, %v2033
    %v2056 = vmul.f32 %v1880, %v2034
    %v2057 = vmul.f32 %v1881, %v2035
    %2080 = vrot.lane.b32.xlu0 %v2036, 1
    %v2081 = vpop.permute.xlu0 %2080
    %2082 = vrot.lane.b32.xlu0 %v2037, 1
    %v2083 = vpop.permute.xlu0 %2082
    %2084 = vrot.lane.b32.xlu0 %v2038, 1
    %v2085 = vpop.permute.xlu0 %2084
    %2086 = vrot.lane.b32.xlu0 %v2039, 1
    %v2087 = vpop.permute.xlu0 %2086
    %2088 = vrot.lane.b32.xlu0 %v2040, 1
    %v2089 = vpop.permute.xlu0 %2088
    %2090 = vrot.lane.b32.xlu0 %v2041, 1
    %v2091 = vpop.permute.xlu0 %2090
    %2092 = vrot.lane.b32.xlu0 %v2042, 1
    %v2093 = vpop.permute.xlu0 %2092
    %2094 = vrot.lane.b32.xlu0 %v2043, 1
    %v2095 = vpop.permute.xlu0 %2094
    %2096 = vrot.lane.b32.xlu0 %v2044, 1
    %v2097 = vpop.permute.xlu0 %2096
    %2098 = vrot.lane.b32.xlu0 %v2045, 1
    %v2099 = vpop.permute.xlu0 %2098
    %2100 = vrot.lane.b32.xlu0 %v2046, 1
    %v2101 = vpop.permute.xlu0 %2100
    %2102 = vrot.lane.b32.xlu0 %v2047, 1
    %v2103 = vpop.permute.xlu0 %2102
    %2104 = vrot.lane.b32.xlu0 %v2048, 1
    %v2105 = vpop.permute.xlu0 %2104
    %2106 = vrot.lane.b32.xlu0 %v2049, 1
    %v2107 = vpop.permute.xlu0 %2106
    %2108 = vrot.lane.b32.xlu0 %v2050, 1
    %v2109 = vpop.permute.xlu0 %2108
    %2110 = vrot.lane.b32.xlu0 %v2051, 1
    %v2111 = vpop.permute.xlu0 %2110
    %2112 = vrot.lane.b32.xlu0 %v2052, 1
    %v2113 = vpop.permute.xlu0 %2112
    %2114 = vrot.lane.b32.xlu0 %v2053, 1
    %v2115 = vpop.permute.xlu0 %2114
    %2116 = vrot.lane.b32.xlu0 %v2054, 1
    %v2117 = vpop.permute.xlu0 %2116
    %2118 = vrot.lane.b32.xlu0 %v2055, 1
    %v2119 = vpop.permute.xlu0 %2118
    %2120 = vrot.lane.b32.xlu0 %v2056, 1
    %v2121 = vpop.permute.xlu0 %2120
    %2122 = vrot.lane.b32.xlu0 %v2057, 1
    %v2123 = vpop.permute.xlu0 %2122
    %v2146 = vsub.f32 %v1992, %v2081
    %v2147 = vsub.f32 %v1993, %v2083
    %v2148 = vsub.f32 %v1994, %v2085
    %v2149 = vsub.f32 %v1995, %v2087
    %v2150 = vsub.f32 %v1996, %v2089
    %v2151 = vsub.f32 %v1997, %v2091
    %v2152 = vsub.f32 %v1998, %v2093
    %v2153 = vsub.f32 %v1999, %v2095
    %v2154 = vsub.f32 %v2000, %v2097
    %v2155 = vsub.f32 %v2001, %v2099
    %v2156 = vsub.f32 %v2002, %v2101
    %v2157 = vsub.f32 %v2003, %v2103
    %v2158 = vsub.f32 %v2004, %v2105
    %v2159 = vsub.f32 %v2005, %v2107
    %v2160 = vsub.f32 %v2006, %v2109
    %v2161 = vsub.f32 %v2007, %v2111
    %v2162 = vsub.f32 %v2008, %v2113
    %v2163 = vsub.f32 %v2009, %v2115
    %v2164 = vsub.f32 %v2010, %v2117
    %v2165 = vsub.f32 %v2011, %v2119
    %v2166 = vsub.f32 %v2012, %v2121
    %v2167 = vsub.f32 %v2013, %v2123
    %2169 = vset.pattern.permute.xlu0 0
    %2170 = vperm.xlu0 %2169, %v2014
    %v2171 = vpop.permute.xlu0 %2170
    %2174 = vset.pattern.permute.xlu0 0
    %2175 = vperm.xlu0 %2174, %v2015
    %v2176 = vpop.permute.xlu0 %2175
    %2179 = vset.pattern.permute.xlu0 0
    %2180 = vperm.xlu0 %2179, %v2016
    %v2181 = vpop.permute.xlu0 %2180
    %2184 = vset.pattern.permute.xlu0 0
    %2185 = vperm.xlu0 %2184, %v2017
    %v2186 = vpop.permute.xlu0 %2185
    %2189 = vset.pattern.permute.xlu0 0
    %2190 = vperm.xlu0 %2189, %v2018
    %v2191 = vpop.permute.xlu0 %2190
    %2194 = vset.pattern.permute.xlu0 0
    %2195 = vperm.xlu0 %2194, %v2019
    %v2196 = vpop.permute.xlu0 %2195
    %2199 = vset.pattern.permute.xlu0 0
    %2200 = vperm.xlu0 %2199, %v2020
    %v2201 = vpop.permute.xlu0 %2200
    %2204 = vset.pattern.permute.xlu0 0
    %2205 = vperm.xlu0 %2204, %v2021
    %v2206 = vpop.permute.xlu0 %2205
    %2209 = vset.pattern.permute.xlu0 0
    %2210 = vperm.xlu0 %2209, %v2022
    %v2211 = vpop.permute.xlu0 %2210
    %2214 = vset.pattern.permute.xlu0 0
    %2215 = vperm.xlu0 %2214, %v2023
    %v2216 = vpop.permute.xlu0 %2215
    %2219 = vset.pattern.permute.xlu0 0
    %2220 = vperm.xlu0 %2219, %v2024
    %v2221 = vpop.permute.xlu0 %2220
    %2224 = vset.pattern.permute.xlu0 0
    %2225 = vperm.xlu0 %2224, %v2025
    %v2226 = vpop.permute.xlu0 %2225
    %2229 = vset.pattern.permute.xlu0 0
    %2230 = vperm.xlu0 %2229, %v2026
    %v2231 = vpop.permute.xlu0 %2230
    %2234 = vset.pattern.permute.xlu0 0
    %2235 = vperm.xlu0 %2234, %v2027
    %v2236 = vpop.permute.xlu0 %2235
    %2239 = vset.pattern.permute.xlu0 0
    %2240 = vperm.xlu0 %2239, %v2028
    %v2241 = vpop.permute.xlu0 %2240
    %2244 = vset.pattern.permute.xlu0 0
    %2245 = vperm.xlu0 %2244, %v2029
    %v2246 = vpop.permute.xlu0 %2245
    %2249 = vset.pattern.permute.xlu0 0
    %2250 = vperm.xlu0 %2249, %v2030
    %v2251 = vpop.permute.xlu0 %2250
    %2254 = vset.pattern.permute.xlu0 0
    %2255 = vperm.xlu0 %2254, %v2031
    %v2256 = vpop.permute.xlu0 %2255
    %2259 = vset.pattern.permute.xlu0 0
    %2260 = vperm.xlu0 %2259, %v2032
    %v2261 = vpop.permute.xlu0 %2260
    %2264 = vset.pattern.permute.xlu0 0
    %2265 = vperm.xlu0 %2264, %v2033
    %v2266 = vpop.permute.xlu0 %2265
    %2269 = vset.pattern.permute.xlu0 0
    %2270 = vperm.xlu0 %2269, %v2034
    %v2271 = vpop.permute.xlu0 %2270
    %2274 = vset.pattern.permute.xlu0 0
    %2275 = vperm.xlu0 %2274, %v2035
    %v2276 = vpop.permute.xlu0 %2275
    %v2278 = vmul.f32 %v1509, %v2171
    %v2279 = vmul.f32 %v1511, %v2171
    %v2280 = vmul.f32 %v1515, %v2176
    %v2281 = vmul.f32 %v1517, %v2176
    %v2282 = vmul.f32 %v1521, %v2181
    %v2283 = vmul.f32 %v1523, %v2181
    %v2284 = vmul.f32 %v1527, %v2186
    %v2285 = vmul.f32 %v1529, %v2186
    %v2286 = vmul.f32 %v1533, %v2191
    %v2287 = vmul.f32 %v1535, %v2191
    %v2288 = vmul.f32 %v1539, %v2196
    %v2289 = vmul.f32 %v1541, %v2196
    %v2290 = vmul.f32 %v1545, %v2201
    %v2291 = vmul.f32 %v1547, %v2201
    %v2292 = vmul.f32 %v1551, %v2206
    %v2293 = vmul.f32 %v1553, %v2206
    %v2294 = vmul.f32 %v1557, %v2211
    %v2295 = vmul.f32 %v1559, %v2211
    %v2296 = vmul.f32 %v1563, %v2216
    %v2297 = vmul.f32 %v1565, %v2216
    %v2298 = vmul.f32 %v1569, %v2221
    %v2299 = vmul.f32 %v1571, %v2221
    %v2300 = vmul.f32 %v1575, %v2226
    %v2301 = vmul.f32 %v1577, %v2226
    %v2302 = vmul.f32 %v1581, %v2231
    %v2303 = vmul.f32 %v1583, %v2231
    %v2304 = vmul.f32 %v1587, %v2236
    %v2305 = vmul.f32 %v1589, %v2236
    %v2306 = vmul.f32 %v1593, %v2241
    %v2307 = vmul.f32 %v1595, %v2241
    %v2308 = vmul.f32 %v1599, %v2246
    %v2309 = vmul.f32 %v1601, %v2246
    %v2310 = vmul.f32 %v1605, %v2251
    %v2311 = vmul.f32 %v1607, %v2251
    %v2312 = vmul.f32 %v1611, %v2256
    %v2313 = vmul.f32 %v1613, %v2256
    %v2314 = vmul.f32 %v1617, %v2261
    %v2315 = vmul.f32 %v1619, %v2261
    %v2316 = vmul.f32 %v1623, %v2266
    %v2317 = vmul.f32 %v1625, %v2266
    %v2318 = vmul.f32 %v1629, %v2271
    %v2319 = vmul.f32 %v1631, %v2271
    %v2320 = vmul.f32 %v1635, %v2276
    %v2321 = vmul.f32 %v1637, %v2276
    %2323 = vset.pattern.permute.xlu0 1
    %2324 = vperm.xlu0 %2323, %v2146
    %v2325 = vpop.permute.xlu0 %2324
    %2328 = vset.pattern.permute.xlu0 1
    %2329 = vperm.xlu0 %2328, %v2147
    %v2330 = vpop.permute.xlu0 %2329
    %2333 = vset.pattern.permute.xlu0 1
    %2334 = vperm.xlu0 %2333, %v2148
    %v2335 = vpop.permute.xlu0 %2334
    %2338 = vset.pattern.permute.xlu0 1
    %2339 = vperm.xlu0 %2338, %v2149
    %v2340 = vpop.permute.xlu0 %2339
    %2343 = vset.pattern.permute.xlu0 1
    %2344 = vperm.xlu0 %2343, %v2150
    %v2345 = vpop.permute.xlu0 %2344
    %2348 = vset.pattern.permute.xlu0 1
    %2349 = vperm.xlu0 %2348, %v2151
    %v2350 = vpop.permute.xlu0 %2349
    %2353 = vset.pattern.permute.xlu0 1
    %2354 = vperm.xlu0 %2353, %v2152
    %v2355 = vpop.permute.xlu0 %2354
    %2358 = vset.pattern.permute.xlu0 1
    %2359 = vperm.xlu0 %2358, %v2153
    %v2360 = vpop.permute.xlu0 %2359
    %2363 = vset.pattern.permute.xlu0 1
    %2364 = vperm.xlu0 %2363, %v2154
    %v2365 = vpop.permute.xlu0 %2364
    %2368 = vset.pattern.permute.xlu0 1
    %2369 = vperm.xlu0 %2368, %v2155
    %v2370 = vpop.permute.xlu0 %2369
    %2373 = vset.pattern.permute.xlu0 1
    %2374 = vperm.xlu0 %2373, %v2156
    %v2375 = vpop.permute.xlu0 %2374
    %2378 = vset.pattern.permute.xlu0 1
    %2379 = vperm.xlu0 %2378, %v2157
    %v2380 = vpop.permute.xlu0 %2379
    %2383 = vset.pattern.permute.xlu0 1
    %2384 = vperm.xlu0 %2383, %v2158
    %v2385 = vpop.permute.xlu0 %2384
    %2388 = vset.pattern.permute.xlu0 1
    %2389 = vperm.xlu0 %2388, %v2159
    %v2390 = vpop.permute.xlu0 %2389
    %2393 = vset.pattern.permute.xlu0 1
    %2394 = vperm.xlu0 %2393, %v2160
    %v2395 = vpop.permute.xlu0 %2394
    %2398 = vset.pattern.permute.xlu0 1
    %2399 = vperm.xlu0 %2398, %v2161
    %v2400 = vpop.permute.xlu0 %2399
    %2403 = vset.pattern.permute.xlu0 1
    %2404 = vperm.xlu0 %2403, %v2162
    %v2405 = vpop.permute.xlu0 %2404
    %2408 = vset.pattern.permute.xlu0 1
    %2409 = vperm.xlu0 %2408, %v2163
    %v2410 = vpop.permute.xlu0 %2409
    %2413 = vset.pattern.permute.xlu0 1
    %2414 = vperm.xlu0 %2413, %v2164
    %v2415 = vpop.permute.xlu0 %2414
    %2418 = vset.pattern.permute.xlu0 1
    %2419 = vperm.xlu0 %2418, %v2165
    %v2420 = vpop.permute.xlu0 %2419
    %2423 = vset.pattern.permute.xlu0 1
    %2424 = vperm.xlu0 %2423, %v2166
    %v2425 = vpop.permute.xlu0 %2424
    %2428 = vset.pattern.permute.xlu0 1
    %2429 = vperm.xlu0 %2428, %v2167
    %v2430 = vpop.permute.xlu0 %2429
    %v2432 = vadd.f32 %v2278, %v2325
    %v2433 = vadd.f32 %v2279, %v2325
    %v2434 = vadd.f32 %v2280, %v2330
    %v2435 = vadd.f32 %v2281, %v2330
    %v2436 = vadd.f32 %v2282, %v2335
    %v2437 = vadd.f32 %v2283, %v2335
    %v2438 = vadd.f32 %v2284, %v2340
    %v2439 = vadd.f32 %v2285, %v2340
    %v2440 = vadd.f32 %v2286, %v2345
    %v2441 = vadd.f32 %v2287, %v2345
    %v2442 = vadd.f32 %v2288, %v2350
    %v2443 = vadd.f32 %v2289, %v2350
    %v2444 = vadd.f32 %v2290, %v2355
    %v2445 = vadd.f32 %v2291, %v2355
    %v2446 = vadd.f32 %v2292, %v2360
    %v2447 = vadd.f32 %v2293, %v2360
    %v2448 = vadd.f32 %v2294, %v2365
    %v2449 = vadd.f32 %v2295, %v2365
    %v2450 = vadd.f32 %v2296, %v2370
    %v2451 = vadd.f32 %v2297, %v2370
    %v2452 = vadd.f32 %v2298, %v2375
    %v2453 = vadd.f32 %v2299, %v2375
    %v2454 = vadd.f32 %v2300, %v2380
    %v2455 = vadd.f32 %v2301, %v2380
    %v2456 = vadd.f32 %v2302, %v2385
    %v2457 = vadd.f32 %v2303, %v2385
    %v2458 = vadd.f32 %v2304, %v2390
    %v2459 = vadd.f32 %v2305, %v2390
    %v2460 = vadd.f32 %v2306, %v2395
    %v2461 = vadd.f32 %v2307, %v2395
    %v2462 = vadd.f32 %v2308, %v2400
    %v2463 = vadd.f32 %v2309, %v2400
    %v2464 = vadd.f32 %v2310, %v2405
    %v2465 = vadd.f32 %v2311, %v2405
    %v2466 = vadd.f32 %v2312, %v2410
    %v2467 = vadd.f32 %v2313, %v2410
    %v2468 = vadd.f32 %v2314, %v2415
    %v2469 = vadd.f32 %v2315, %v2415
    %v2470 = vadd.f32 %v2316, %v2420
    %v2471 = vadd.f32 %v2317, %v2420
    %v2472 = vadd.f32 %v2318, %v2425
    %v2473 = vadd.f32 %v2319, %v2425
    %v2474 = vadd.f32 %v2320, %v2430
    %v2475 = vadd.f32 %v2321, %v2430
    %2476 = vst [vmem:[#allocation2] sm:$0xff] %v2432
    %2477 = vst.msk [vmem:[#allocation2 + $0x8] sm:$0xff] %vm1639, %v2433
    %2478 = vst [vmem:[#allocation2 + $0x10] sm:$0xff] %v2434
    %2479 = vst.msk [vmem:[#allocation2 + $0x18] sm:$0xff] %vm1639, %v2435
    %2480 = vst [vmem:[#allocation2 + $0x20] sm:$0xff] %v2436
    %2481 = vst.msk [vmem:[#allocation2 + $0x28] sm:$0xff] %vm1639, %v2437
    %2482 = vst [vmem:[#allocation2 + $0x30] sm:$0xff] %v2438
    %2483 = vst.msk [vmem:[#allocation2 + $0x38] sm:$0xff] %vm1639, %v2439
    %2484 = vst [vmem:[#allocation2 + $0x40] sm:$0xff] %v2440
    %2485 = vst.msk [vmem:[#allocation2 + $0x48] sm:$0xff] %vm1639, %v2441
    %2486 = vst [vmem:[#allocation2 + $0x50] sm:$0xff] %v2442
    %2487 = vst.msk [vmem:[#allocation2 + $0x58] sm:$0xff] %vm1639, %v2443
    %2488 = vst [vmem:[#allocation2 + $0x60] sm:$0xff] %v2444
    %2489 = vst.msk [vmem:[#allocation2 + $0x68] sm:$0xff] %vm1639, %v2445
    %2490 = vst [vmem:[#allocation2 + $0x70] sm:$0xff] %v2446
    %2491 = vst.msk [vmem:[#allocation2 + $0x78] sm:$0xff] %vm1639, %v2447
    %2492 = vst [vmem:[#allocation2 + $0x80] sm:$0xff] %v2448
    %2493 = vst.msk [vmem:[#allocation2 + $0x88] sm:$0xff] %vm1639, %v2449
    %2494 = vst [vmem:[#allocation2 + $0x90] sm:$0xff] %v2450
    %2495 = vst.msk [vmem:[#allocation2 + $0x98] sm:$0xff] %vm1639, %v2451
    %2496 = vst [vmem:[#allocation2 + $0xa0] sm:$0xff] %v2452
    %2497 = vst.msk [vmem:[#allocation2 + $0xa8] sm:$0xff] %vm1639, %v2453
    %2498 = vst [vmem:[#allocation2 + $0xb0] sm:$0xff] %v2454
    %2499 = vst.msk [vmem:[#allocation2 + $0xb8] sm:$0xff] %vm1639, %v2455
    %2500 = vst [vmem:[#allocation2 + $0xc0] sm:$0xff] %v2456
    %2501 = vst.msk [vmem:[#allocation2 + $0xc8] sm:$0xff] %vm1639, %v2457
    %2502 = vst [vmem:[#allocation2 + $0xd0] sm:$0xff] %v2458
    %2503 = vst.msk [vmem:[#allocation2 + $0xd8] sm:$0xff] %vm1639, %v2459
    %2504 = vst [vmem:[#allocation2 + $0xe0] sm:$0xff] %v2460
    %2505 = vst.msk [vmem:[#allocation2 + $0xe8] sm:$0xff] %vm1639, %v2461
    %2506 = vst [vmem:[#allocation2 + $0xf0] sm:$0xff] %v2462
    %2507 = vst.msk [vmem:[#allocation2 + $0xf8] sm:$0xff] %vm1639, %v2463
    %2508 = vst [vmem:[#allocation2 + $0x100] sm:$0xff] %v2464
    %2509 = vst.msk [vmem:[#allocation2 + $0x108] sm:$0xff] %vm1639, %v2465
    %2510 = vst [vmem:[#allocation2 + $0x110] sm:$0xff] %v2466
    %2511 = vst.msk [vmem:[#allocation2 + $0x118] sm:$0xff] %vm1639, %v2467
    %2512 = vst [vmem:[#allocation2 + $0x120] sm:$0xff] %v2468
    %2513 = vst.msk [vmem:[#allocation2 + $0x128] sm:$0xff] %vm1639, %v2469
    %2514 = vst [vmem:[#allocation2 + $0x130] sm:$0xff] %v2470
    %2515 = vst.msk [vmem:[#allocation2 + $0x138] sm:$0xff] %vm1639, %v2471
    %2516 = vst [vmem:[#allocation2 + $0x140] sm:$0xff] %v2472
    %2517 = vst.msk [vmem:[#allocation2 + $0x148] sm:$0xff] %vm1639, %v2473
    %2518 = vst [vmem:[#allocation2 + $0x150] sm:$0xff] %v2474
    %2519 = vst.msk [vmem:[#allocation2 + $0x158] sm:$0xff] %vm1639, %v2475
    // Predicated region
    $region14: #{tpu_custom_call.1} parent=1 // pred_check
      _
    $region15: #{tpu_custom_call.1} parent=1 // pred_check_branch
      %2521 = sbr.rel (0) target = $region17
    $region16: #{tpu_custom_call.1} parent=1 // pred_region
      %s2523 = ssub.s32 5632, 5632
      %2524 = vsyncadd [#allocation3], %s2523
      %s2525 = sshll.u32 [#allocation2], 4
      %s2526 = int_to_ptr.vmem [resolvable:$true] %s2525
      %2531 = dma.vmem_to_hbm [thread:$0]  %s2526, 5632, %s3, [#allocation3], 256, 256, 16
    $region17: #{tpu_custom_call.1} parent=1 // pred_fallthru
      _
    // Predicated region
    $region18: #{tpu_custom_call.1} parent=1 // pred_check
      _
    $region19: #{tpu_custom_call.1} parent=1 // pred_check_branch
      %2533 = sbr.rel (0) target = $region21
    $region20: #{tpu_custom_call.1} parent=1 // pred_region
      %2534 = dma.done [#allocation3], 5632
    $region21: #{tpu_custom_call.1} parent=1 // pred_fallthru
      _
    %2535 = vsyncpa [#allocation3], 1

</llo_original>
